<compile_context>
chip_gen: v5e
topology: v5e:2x2
jax: 0.10.0
libtpu: 0.0.40
codegen_flags: <defaults>
</compile_context>

<pallas_src>
import jax
import jax.numpy as jnp
from jax.experimental import pallas as pl
from jax.experimental.pallas import tpu as pltpu

HIDDEN = 512    # fixed by the module definition
OUT_PAD = 128   # fc4 output padded to one lane-width for a dense store


def critic_kernel(x_ref, w1_ref, b1_ref, w2_ref, b2_ref, w3_ref, b3_ref,
                  w4_ref, b4_ref, o_ref):
    # fc1 + ReLU (single K = s_dim+a_dim+g_dim matmul; concat done host-side)
    h = jnp.dot(x_ref[...], w1_ref[...], preferred_element_type=jnp.float32)
    h = jnp.maximum(h + b1_ref[...], 0.0)
    # fc2 + ReLU
    h = jnp.dot(h.astype(w2_ref.dtype), w2_ref[...],
                preferred_element_type=jnp.float32)
    h = jnp.maximum(h + b2_ref[...], 0.0)
    # fc3 + ReLU
    h = jnp.dot(h.astype(w3_ref.dtype), w3_ref[...],
                preferred_element_type=jnp.float32)
    h = jnp.maximum(h + b3_ref[...], 0.0)
    # fc4 as a padded MXU matmul: w4 is (512, 128) with the real column in
    # lane 0 and zeros elsewhere; output block is lane-dense (tm, 128).
    o = jnp.dot(h.astype(w4_ref.dtype), w4_ref[...],
                preferred_element_type=jnp.float32)
    o_ref[...] = (o + b4_ref[...]).astype(o_ref.dtype)


def critic_forward(state, action, goal, params, *, tm=1024,
                   weight_dtype=jnp.bfloat16):
    B = state.shape[0]
    (w1, b1), (w2, b2), (w3, b3), (w4, b4) = params
    in_dim = w1.shape[0]

    # Host-side concat fused with the bf16 cast -> one (B, in_dim) bf16 input.
    x = jnp.concatenate([state, action, goal], axis=1).astype(weight_dtype)

    # fc4: pad (512, 1) -> (512, 128); broadcast b4 across the padded lanes
    # (only column 0 is kept by the host-side slice).
    w4_pad = jnp.pad(w4, ((0, 0), (0, OUT_PAD - w4.shape[1])))
    b4_pad = jnp.broadcast_to(b4.reshape(1, 1), (1, OUT_PAD))

    cast = lambda t: t.astype(weight_dtype)
    w1c, w2c, w3c, w4c = map(cast, (w1, w2, w3, w4_pad))

    # Batch tiling:
    #   * B <= 8: single full-array tile (block == array satisfies tiling).
    #   * B  > 8: tile is a multiple of 8 (sublane), capped at ~B/2 so the
    #     grid always has >= 2 steps and both v7x TensorCores get work; the
    #     ragged last block is handled by Pallas boundary masking (no pad).
    if B <= 8:
        tm_eff = B
    else:
        half = pl.cdiv(pl.cdiv(B, 2), 8) * 8
        tm_eff = min(tm, half)
    grid = (pl.cdiv(B, tm_eff),)

    tile = lambda cols: pl.BlockSpec((tm_eff, cols), lambda i: (i, 0))
    # Constant index_map -> weights/biases DMA'd once, VMEM-resident.
    whole = lambda r, c: pl.BlockSpec((r, c), lambda i: (0, 0))

    out = pl.pallas_call(
        critic_kernel,
        out_shape=jax.ShapeDtypeStruct((B, OUT_PAD), jnp.float32),
        grid=grid,
        in_specs=[
            tile(in_dim),
            whole(in_dim, HIDDEN), whole(1, HIDDEN),
            whole(HIDDEN, HIDDEN), whole(1, HIDDEN),
            whole(HIDDEN, HIDDEN), whole(1, HIDDEN),
            whole(HIDDEN, OUT_PAD), whole(1, OUT_PAD),
        ],
        out_specs=tile(OUT_PAD),
        compiler_params=pltpu.CompilerParams(
            dimension_semantics=("parallel",)),
    )(x, w1c, b1, w2c, b2, w3c, b3, w4c, b4_pad)

    return out[:B, :1]


def critic_reference(state, action, goal, params, weight_dtype=jnp.bfloat16):
    # Pure-JAX reference with the same bf16-weight / f32-accumulate recipe.
    (w1, b1), (w2, b2), (w3, b3), (w4, b4) = params
    x = jnp.concatenate([state, action, goal], axis=1).astype(weight_dtype)
    h = jnp.dot(x, w1.astype(weight_dtype), preferred_element_type=jnp.float32)
    h = jnp.maximum(h + b1, 0.0)
    h = jnp.dot(h.astype(weight_dtype), w2.astype(weight_dtype),
                preferred_element_type=jnp.float32)
    h = jnp.maximum(h + b2, 0.0)
    h = jnp.dot(h.astype(weight_dtype), w3.astype(weight_dtype),
                preferred_element_type=jnp.float32)
    h = jnp.maximum(h + b3, 0.0)
    return jnp.dot(h.astype(weight_dtype), w4.astype(weight_dtype),
                   preferred_element_type=jnp.float32) + b4


def init_linear(key, in_dim, out_dim):
    # PyTorch-style uniform init; weight stored [in, out].
    kw, kb = jax.random.split(key)
    bound = 1.0 / jnp.sqrt(in_dim)
    w = jax.random.uniform(kw, (in_dim, out_dim), jnp.float32, -bound, bound)
    b = jax.random.uniform(kb, (1, out_dim), jnp.float32, -bound, bound)
    return w, b


if __name__ == "__main__":
    key = jax.random.PRNGKey(0)

    state_dim, action_dim, goal_dim = 16, 8, 8
    in_dim = state_dim + action_dim + goal_dim

    k_s, k_a, k_g, k1, k2, k3, k4 = jax.random.split(key, 7)
    params = (
        init_linear(k1, in_dim, HIDDEN),
        init_linear(k2, HIDDEN, HIDDEN),
        init_linear(k3, HIDDEN, HIDDEN),
        init_linear(k4, HIDDEN, 1),
    )

    def make_inputs(seed, batch):
        ks, ka, kg = jax.random.split(jax.random.PRNGKey(seed), 3)
        return (jax.random.normal(ks, (batch, state_dim), jnp.float32),
                jax.random.normal(ka, (batch, action_dim), jnp.float32),
                jax.random.normal(kg, (batch, goal_dim), jnp.float32))

    # 1) Tiny batch -> single full-array tile.
    batch = 2
    state = jax.random.normal(k_s, (batch, state_dim), jnp.float32)
    action = jax.random.normal(k_a, (batch, action_dim), jnp.float32)
    goal = jax.random.normal(k_g, (batch, goal_dim), jnp.float32)
    out = critic_forward(state, action, goal, params)
    jax.block_until_ready(out)
    ref = critic_reference(state, action, goal, params)
    assert out.shape == (batch, 1)
    assert jnp.allclose(out, ref, atol=5e-3, rtol=5e-3)

    # 2) Multi-tile path with a ragged (masked) last block, small tile size.
    s2, a2, g2 = make_inputs(1, 20)
    out2 = critic_forward(s2, a2, g2, params, tm=8)
    jax.block_until_ready(out2)
    ref2 = critic_reference(s2, a2, g2, params)
    assert out2.shape == (20, 1)
    assert jnp.allclose(out2, ref2, atol=5e-3, rtol=5e-3)

    # 3) Mid-size batch, default tile -> >= 2 grid steps (v7x megacore path).
    s3, a3, g3 = make_inputs(2, 300)
    out3 = critic_forward(s3, a3, g3, params)
    jax.block_until_ready(out3)
    ref3 = critic_reference(s3, a3, g3, params)
    assert out3.shape == (300, 1)
    assert jnp.allclose(out3, ref3, atol=5e-3, rtol=5e-3)

    print("KERNEL_OK")
</pallas_src>

<mosaic_0001>
module attributes {stable_mosaic.version = 11 : i64} {
  func.func @critic_kernel(%arg0: i32, %arg1: memref<2x32xbf16, #tpu.memory_space<vmem>>, %arg2: memref<32x512xbf16, #tpu.memory_space<vmem>>, %arg3: memref<1x512xf32, #tpu.memory_space<vmem>>, %arg4: memref<512x512xbf16, #tpu.memory_space<vmem>>, %arg5: memref<1x512xf32, #tpu.memory_space<vmem>>, %arg6: memref<512x512xbf16, #tpu.memory_space<vmem>>, %arg7: memref<1x512xf32, #tpu.memory_space<vmem>>, %arg8: memref<512x128xbf16, #tpu.memory_space<vmem>>, %arg9: memref<1x128xf32, #tpu.memory_space<vmem>>, %arg10: memref<2x128xf32, #tpu.memory_space<vmem>>) attributes {dimension_semantics = [#tpu.dimension_semantics<parallel>], iteration_bounds = array<i64: 1>, scalar_prefetch = 0 : i64, scratch_operands = 0 : i64, tpu.core_type = #tpu.core_type<tc>, window_params = [{transform_indices = @transform_0, window_bounds = array<i64: 2, 32>}, {pipeline_mode = #tpu.pipeline_mode<synchronous>, transform_indices = @transform_1, window_bounds = array<i64: 32, 512>}, {pipeline_mode = #tpu.pipeline_mode<synchronous>, transform_indices = @transform_2, window_bounds = array<i64: 1, 512>}, {pipeline_mode = #tpu.pipeline_mode<synchronous>, transform_indices = @transform_3, window_bounds = array<i64: 512, 512>}, {pipeline_mode = #tpu.pipeline_mode<synchronous>, transform_indices = @transform_4, window_bounds = array<i64: 1, 512>}, {pipeline_mode = #tpu.pipeline_mode<synchronous>, transform_indices = @transform_5, window_bounds = array<i64: 512, 512>}, {pipeline_mode = #tpu.pipeline_mode<synchronous>, transform_indices = @transform_6, window_bounds = array<i64: 1, 512>}, {pipeline_mode = #tpu.pipeline_mode<synchronous>, transform_indices = @transform_7, window_bounds = array<i64: 512, 128>}, {pipeline_mode = #tpu.pipeline_mode<synchronous>, transform_indices = @transform_8, window_bounds = array<i64: 1, 128>}, {transform_indices = @transform_9, window_bounds = array<i64: 2, 128>}]} {
    %c0 = arith.constant 0 : index
    %c0_0 = arith.constant 0 : index
    %0 = vector.load %arg1[%c0, %c0_0] : memref<2x32xbf16, #tpu.memory_space<vmem>>, vector<2x32xbf16>
    %c0_1 = arith.constant 0 : index
    %c0_2 = arith.constant 0 : index
    %1 = vector.load %arg2[%c0_1, %c0_2] : memref<32x512xbf16, #tpu.memory_space<vmem>>, vector<32x512xbf16>
    %cst = arith.constant dense<0.000000e+00> : vector<2x512xf32>
    %2 = tpu.matmul %0, %1, %cst {dimension_numbers = #tpu.dot_dimension_numbers<[1], [0], [0], [1], [0, 0, 1, 1], [], []>} : vector<2x32xbf16>, vector<32x512xbf16>, vector<2x512xf32> -> vector<2x512xf32>
    %c0_3 = arith.constant 0 : index
    %c0_4 = arith.constant 0 : index
    %3 = vector.load %arg3[%c0_3, %c0_4] : memref<1x512xf32, #tpu.memory_space<vmem>>, vector<1x512xf32>
    %4 = vector.broadcast %3 : vector<1x512xf32> to vector<2x512xf32>
    %5 = arith.addf %2, %4 : vector<2x512xf32>
    %cst_5 = arith.constant 0.000000e+00 : f32
    %6 = vector.broadcast %cst_5 : f32 to vector<2x512xf32>
    %7 = arith.maximumf %5, %6 : vector<2x512xf32>
    %8 = arith.truncf %7 : vector<2x512xf32> to vector<2x512xbf16>
    %c0_6 = arith.constant 0 : index
    %c0_7 = arith.constant 0 : index
    %9 = vector.load %arg4[%c0_6, %c0_7] : memref<512x512xbf16, #tpu.memory_space<vmem>>, vector<512x512xbf16>
    %cst_8 = arith.constant dense<0.000000e+00> : vector<2x512xf32>
    %10 = tpu.matmul %8, %9, %cst_8 {dimension_numbers = #tpu.dot_dimension_numbers<[1], [0], [0], [1], [0, 0, 1, 1], [], []>} : vector<2x512xbf16>, vector<512x512xbf16>, vector<2x512xf32> -> vector<2x512xf32>
    %c0_9 = arith.constant 0 : index
    %c0_10 = arith.constant 0 : index
    %11 = vector.load %arg5[%c0_9, %c0_10] : memref<1x512xf32, #tpu.memory_space<vmem>>, vector<1x512xf32>
    %12 = vector.broadcast %11 : vector<1x512xf32> to vector<2x512xf32>
    %13 = arith.addf %10, %12 : vector<2x512xf32>
    %cst_11 = arith.constant 0.000000e+00 : f32
    %14 = vector.broadcast %cst_11 : f32 to vector<2x512xf32>
    %15 = arith.maximumf %13, %14 : vector<2x512xf32>
    %16 = arith.truncf %15 : vector<2x512xf32> to vector<2x512xbf16>
    %c0_12 = arith.constant 0 : index
    %c0_13 = arith.constant 0 : index
    %17 = vector.load %arg6[%c0_12, %c0_13] : memref<512x512xbf16, #tpu.memory_space<vmem>>, vector<512x512xbf16>
    %cst_14 = arith.constant dense<0.000000e+00> : vector<2x512xf32>
    %18 = tpu.matmul %16, %17, %cst_14 {dimension_numbers = #tpu.dot_dimension_numbers<[1], [0], [0], [1], [0, 0, 1, 1], [], []>} : vector<2x512xbf16>, vector<512x512xbf16>, vector<2x512xf32> -> vector<2x512xf32>
    %c0_15 = arith.constant 0 : index
    %c0_16 = arith.constant 0 : index
    %19 = vector.load %arg7[%c0_15, %c0_16] : memref<1x512xf32, #tpu.memory_space<vmem>>, vector<1x512xf32>
    %20 = vector.broadcast %19 : vector<1x512xf32> to vector<2x512xf32>
    %21 = arith.addf %18, %20 : vector<2x512xf32>
    %cst_17 = arith.constant 0.000000e+00 : f32
    %22 = vector.broadcast %cst_17 : f32 to vector<2x512xf32>
    %23 = arith.maximumf %21, %22 : vector<2x512xf32>
    %24 = arith.truncf %23 : vector<2x512xf32> to vector<2x512xbf16>
    %c0_18 = arith.constant 0 : index
    %c0_19 = arith.constant 0 : index
    %25 = vector.load %arg8[%c0_18, %c0_19] : memref<512x128xbf16, #tpu.memory_space<vmem>>, vector<512x128xbf16>
    %cst_20 = arith.constant dense<0.000000e+00> : vector<2x128xf32>
    %26 = tpu.matmul %24, %25, %cst_20 {dimension_numbers = #tpu.dot_dimension_numbers<[1], [0], [0], [1], [0, 0, 1, 1], [], []>} : vector<2x512xbf16>, vector<512x128xbf16>, vector<2x128xf32> -> vector<2x128xf32>
    %c0_21 = arith.constant 0 : index
    %c0_22 = arith.constant 0 : index
    %27 = vector.load %arg9[%c0_21, %c0_22] : memref<1x128xf32, #tpu.memory_space<vmem>>, vector<1x128xf32>
    %28 = vector.broadcast %27 : vector<1x128xf32> to vector<2x128xf32>
    %29 = arith.addf %26, %28 : vector<2x128xf32>
    %c0_23 = arith.constant 0 : index
    %c0_24 = arith.constant 0 : index
    %30 = vector.load %arg10[%c0_23, %c0_24] : memref<2x128xf32, #tpu.memory_space<vmem>>, vector<2x128xf32>
    tpu.vector_store %arg10[%c0_23, %c0_24], %29 {strides = array<i32>} : memref<2x128xf32, #tpu.memory_space<vmem>>, vector<2x128xf32>,
    return
  }
  func.func @transform_0(%arg0: i32) -> (i32, i32) {
    %c0_i32 = arith.constant 0 : i32
    %c0_i32_0 = arith.constant 0 : i32
    return %arg0, %c0_i32 : i32, i32
  }
  func.func @transform_1(%arg0: i32) -> (i32, i32) {
    %c0_i32 = arith.constant 0 : i32
    %c0_i32_0 = arith.constant 0 : i32
    %c0_i32_1 = arith.constant 0 : i32
    return %c0_i32, %c0_i32_0 : i32, i32
  }
  func.func @transform_2(%arg0: i32) -> (i32, i32) {
    %c0_i32 = arith.constant 0 : i32
    %c0_i32_0 = arith.constant 0 : i32
    %c0_i32_1 = arith.constant 0 : i32
    return %c0_i32, %c0_i32_0 : i32, i32
  }
  func.func @transform_3(%arg0: i32) -> (i32, i32) {
    %c0_i32 = arith.constant 0 : i32
    %c0_i32_0 = arith.constant 0 : i32
    %c0_i32_1 = arith.constant 0 : i32
    return %c0_i32, %c0_i32_0 : i32, i32
  }
  func.func @transform_4(%arg0: i32) -> (i32, i32) {
    %c0_i32 = arith.constant 0 : i32
    %c0_i32_0 = arith.constant 0 : i32
    %c0_i32_1 = arith.constant 0 : i32
    return %c0_i32, %c0_i32_0 : i32, i32
  }
  func.func @transform_5(%arg0: i32) -> (i32, i32) {
    %c0_i32 = arith.constant 0 : i32
    %c0_i32_0 = arith.constant 0 : i32
    %c0_i32_1 = arith.constant 0 : i32
    return %c0_i32, %c0_i32_0 : i32, i32
  }
  func.func @transform_6(%arg0: i32) -> (i32, i32) {
    %c0_i32 = arith.constant 0 : i32
    %c0_i32_0 = arith.constant 0 : i32
    %c0_i32_1 = arith.constant 0 : i32
    return %c0_i32, %c0_i32_0 : i32, i32
  }
  func.func @transform_7(%arg0: i32) -> (i32, i32) {
    %c0_i32 = arith.constant 0 : i32
    %c0_i32_0 = arith.constant 0 : i32
    %c0_i32_1 = arith.constant 0 : i32
    return %c0_i32, %c0_i32_0 : i32, i32
  }
  func.func @transform_8(%arg0: i32) -> (i32, i32) {
    %c0_i32 = arith.constant 0 : i32
    %c0_i32_0 = arith.constant 0 : i32
    %c0_i32_1 = arith.constant 0 : i32
    return %c0_i32, %c0_i32_0 : i32, i32
  }
  func.func @transform_9(%arg0: i32) -> (i32, i32) {
    %c0_i32 = arith.constant 0 : i32
    %c0_i32_0 = arith.constant 0 : i32
    return %arg0, %c0_i32 : i32, i32
  }
}

</mosaic_0001>

<llo_original>
// kernel: tpu_custom_call.1
$region0: #{tpu_custom_call.1}
  #allocation0 [shape = 'u32[]', space=smem, size = 0x4, offset = 0x4, fixed_abs, tag = 'smem constant byte address 0x4 - core index']
  #allocation1 [shape = 'u32[72,128]{1,0:T(1,128)}', space=vmem, size = 0x9000, scoped, tag = 'internal scratch']
  %s0 = inlined_call_operand.hbm [shape: bf16[2,32], index: 0, kind: input, shape index: {}]
  %s1 = inlined_call_operand.hbm [shape: bf16[32,512], index: 1, kind: input, shape index: {}]
  %s2 = inlined_call_operand.hbm [shape: f32[1,512], index: 2, kind: input, shape index: {}]
  %s3 = inlined_call_operand.hbm [shape: bf16[512,512], index: 3, kind: input, shape index: {}]
  %s4 = inlined_call_operand.hbm [shape: f32[1,512], index: 4, kind: input, shape index: {}]
  %s5 = inlined_call_operand.hbm [shape: bf16[512,512], index: 5, kind: input, shape index: {}]
  %s6 = inlined_call_operand.vmem [shape: f32[1,512], index: 6, kind: input, shape index: {}]
  %s7 = inlined_call_operand.hbm [shape: bf16[512,128], index: 7, kind: input, shape index: {}]
  %s8 = inlined_call_operand.vmem [shape: f32[1,128], index: 8, kind: input, shape index: {}]
  %s9 = inlined_call_operand.hbm [shape: f32[2,128], index: 9, kind: output, shape index: {}]
  %s10 = sld [smem:[#allocation0]]
  $region74: #{tpu_custom_call.1} parent=0
    _
  %s12 = ssub.s32 1, %s10
  %s13 = scalar_select 0, %s12, %s10
  $region1: #{tpu_custom_call.1} parent=0
    #allocation2 [shape = 'u8[512]{0}', space=vmem, size = 0x400, scoped, tag = 'input window, operand 0, single buffered']
    #allocation3 [shape = 's32[1]{0}', space=sflag, size = 0x4, scoped, tag = 'scoped memory for tpu_custom_call.1']
    #allocation4 [shape = 's32[1]{0}', space=sflag, size = 0x4, scoped, tag = 'scoped memory for tpu_custom_call.1']
    #allocation5 [shape = 'u8[32768]{0}', space=vmem, size = 0x8000, scoped, tag = 'input window, operand 1, single buffered']
    #allocation6 [shape = 's32[1]{0}', space=sflag, size = 0x4, scoped, tag = 'scoped memory for tpu_custom_call.1']
    #allocation7 [shape = 'u8[2048]{0}', space=vmem, size = 0x800, scoped, tag = 'input window, operand 2, single buffered']
    #allocation8 [shape = 'u8[524288]{0}', space=vmem, size = 0x80000, scoped, tag = 'input window, operand 3, single buffered']
    #allocation9 [shape = 's32[1]{0}', space=sflag, size = 0x4, scoped, tag = 'scoped memory for tpu_custom_call.1']
    #allocation10 [shape = 'u8[2048]{0}', space=vmem, size = 0x800, scoped, tag = 'input window, operand 4, single buffered']
    #allocation11 [shape = 'u8[524288]{0}', space=vmem, size = 0x80000, scoped, tag = 'input window, operand 5, single buffered']
    #allocation12 [shape = 's32[1]{0}', space=sflag, size = 0x4, scoped, tag = 'scoped memory for tpu_custom_call.1']
    #allocation13 [shape = 'u8[131072]{0}', space=vmem, size = 0x20000, scoped, tag = 'input window, operand 7, single buffered']
    #allocation14 [shape = 'u8[1024]{0}', space=vmem, size = 0x400, scoped, tag = 'output window, operand 0, single buffered']
    %14 = vsyncpa [#allocation3], 0
    %15 = vsyncpa [#allocation6], 0
    %16 = vsyncpa [#allocation9], 0
    %17 = vsyncpa [#allocation12], 0
    %18 = vsyncpa [#allocation4], 0
    // Predicated region
    $region2: #{tpu_custom_call.1} parent=1 // pred_check
      _
    $region3: #{tpu_custom_call.1} parent=1 // pred_check_branch
      %20 = sbr.rel (0) target = $region5
    $region4: #{tpu_custom_call.1} parent=1 // pred_region
      %22 = vsyncadd [#allocation3], 0
      %s24 = sshll.u32 %s0, 4
      %s25 = int_to_ptr.hbm [resolvable:$true] %s24
      %s26 = sshll.u32 [#allocation2], 4
      %s27 = int_to_ptr.vmem [resolvable:$true] %s26
      %29 = dma.hbm_to_vmem [thread:$0]  %s25, 16, %s27, [#allocation3]
    $region5: #{tpu_custom_call.1} parent=1 // pred_fallthru
      _
    // Predicated region
    $region6: #{tpu_custom_call.1} parent=1 // pred_check
      _
    $region7: #{tpu_custom_call.1} parent=1 // pred_check_branch
      %31 = sbr.rel (0) target = $region9
    $region8: #{tpu_custom_call.1} parent=1 // pred_region
      %33 = vsyncadd [#allocation6], 0
      %s34 = sshll.u32 %s1, 4
      %s35 = int_to_ptr.hbm [resolvable:$true] %s34
      %s36 = sshll.u32 [#allocation5], 4
      %s37 = int_to_ptr.vmem [resolvable:$true] %s36
      %42 = dma.hbm_to_vmem [thread:$0]  %s35, 1024, %s37, [#allocation6], 256, 256, 16
    $region9: #{tpu_custom_call.1} parent=1 // pred_fallthru
      _
    // Predicated region
    $region10: #{tpu_custom_call.1} parent=1 // pred_check
      _
    $region11: #{tpu_custom_call.1} parent=1 // pred_check_branch
      %44 = sbr.rel (0) target = $region13
    $region12: #{tpu_custom_call.1} parent=1 // pred_region
      %46 = vsyncadd [#allocation6], 0
      %s48 = sshll.u32 %s2, 4
      %s49 = int_to_ptr.hbm [resolvable:$true] %s48
      %s50 = sshll.u32 [#allocation7], 4
      %s51 = int_to_ptr.vmem [resolvable:$true] %s50
      %53 = dma.hbm_to_vmem [thread:$0]  %s49, 64, %s51, [#allocation6]
    $region13: #{tpu_custom_call.1} parent=1 // pred_fallthru
      _
    // Predicated region
    $region14: #{tpu_custom_call.1} parent=1 // pred_check
      _
    $region15: #{tpu_custom_call.1} parent=1 // pred_check_branch
      %55 = sbr.rel (0) target = $region17
    $region16: #{tpu_custom_call.1} parent=1 // pred_region
      %57 = vsyncadd [#allocation9], 0
      %s58 = sshll.u32 %s3, 4
      %s59 = int_to_ptr.hbm [resolvable:$true] %s58
      %s60 = sshll.u32 [#allocation8], 4
      %s61 = int_to_ptr.vmem [resolvable:$true] %s60
      %66 = dma.hbm_to_vmem [thread:$0]  %s59, 16384, %s61, [#allocation9], 256, 256, 16
    $region17: #{tpu_custom_call.1} parent=1 // pred_fallthru
      _
    // Predicated region
    $region18: #{tpu_custom_call.1} parent=1 // pred_check
      _
    $region19: #{tpu_custom_call.1} parent=1 // pred_check_branch
      %68 = sbr.rel (0) target = $region21
    $region20: #{tpu_custom_call.1} parent=1 // pred_region
      %70 = vsyncadd [#allocation9], 0
      %s72 = sshll.u32 %s4, 4
      %s73 = int_to_ptr.hbm [resolvable:$true] %s72
      %s74 = sshll.u32 [#allocation10], 4
      %s75 = int_to_ptr.vmem [resolvable:$true] %s74
      %77 = dma.hbm_to_vmem [thread:$0]  %s73, 64, %s75, [#allocation9]
    $region21: #{tpu_custom_call.1} parent=1 // pred_fallthru
      _
    // Predicated region
    $region22: #{tpu_custom_call.1} parent=1 // pred_check
      _
    $region23: #{tpu_custom_call.1} parent=1 // pred_check_branch
      %79 = sbr.rel (0) target = $region25
    $region24: #{tpu_custom_call.1} parent=1 // pred_region
      %81 = vsyncadd [#allocation12], 0
      %s82 = sshll.u32 %s5, 4
      %s83 = int_to_ptr.hbm [resolvable:$true] %s82
      %s84 = sshll.u32 [#allocation11], 4
      %s85 = int_to_ptr.vmem [resolvable:$true] %s84
      %90 = dma.hbm_to_vmem [thread:$0]  %s83, 16384, %s85, [#allocation12], 256, 256, 16
    $region25: #{tpu_custom_call.1} parent=1 // pred_fallthru
      _
    // Predicated region
    $region26: #{tpu_custom_call.1} parent=1 // pred_check
      _
    $region27: #{tpu_custom_call.1} parent=1 // pred_check_branch
      %92 = sbr.rel (0) target = $region29
    $region28: #{tpu_custom_call.1} parent=1 // pred_region
      _
    $region29: #{tpu_custom_call.1} parent=1 // pred_fallthru
      _
    // Predicated region
    $region30: #{tpu_custom_call.1} parent=1 // pred_check
      _
    $region31: #{tpu_custom_call.1} parent=1 // pred_check_branch
      %94 = sbr.rel (0) target = $region33
    $region32: #{tpu_custom_call.1} parent=1 // pred_region
      %96 = vsyncadd [#allocation12], 0
      %s97 = sshll.u32 %s7, 4
      %s98 = int_to_ptr.hbm [resolvable:$true] %s97
      %s99 = sshll.u32 [#allocation13], 4
      %s100 = int_to_ptr.vmem [resolvable:$true] %s99
      %105 = dma.hbm_to_vmem [thread:$0]  %s98, 4096, %s100, [#allocation12], 64, 64, 4
    $region33: #{tpu_custom_call.1} parent=1 // pred_fallthru
      _
    // Predicated region
    $region34: #{tpu_custom_call.1} parent=1 // pred_check
      _
    $region35: #{tpu_custom_call.1} parent=1 // pred_check_branch
      %107 = sbr.rel (0) target = $region37
    $region36: #{tpu_custom_call.1} parent=1 // pred_region
      _
    $region37: #{tpu_custom_call.1} parent=1 // pred_fallthru
      _
    // Predicated region
    $region38: #{tpu_custom_call.1} parent=1 // pred_check
      _
    $region39: #{tpu_custom_call.1} parent=1 // pred_check_branch
      %109 = sbr.rel (0) target = $region41
    $region40: #{tpu_custom_call.1} parent=1 // pred_region
      %111 = dma.done [#allocation3], 16
    $region41: #{tpu_custom_call.1} parent=1 // pred_fallthru
      _
    // Predicated region
    $region42: #{tpu_custom_call.1} parent=1 // pred_check
      _
    $region43: #{tpu_custom_call.1} parent=1 // pred_check_branch
      %113 = sbr.rel (0) target = $region45
    $region44: #{tpu_custom_call.1} parent=1 // pred_region
      %115 = dma.done [#allocation6], 1024
    $region45: #{tpu_custom_call.1} parent=1 // pred_fallthru
      _
    // Predicated region
    $region46: #{tpu_custom_call.1} parent=1 // pred_check
      _
    $region47: #{tpu_custom_call.1} parent=1 // pred_check_branch
      %117 = sbr.rel (0) target = $region49
    $region48: #{tpu_custom_call.1} parent=1 // pred_region
      %119 = dma.done [#allocation6], 64
    $region49: #{tpu_custom_call.1} parent=1 // pred_fallthru
      _
    // Predicated region
    $region50: #{tpu_custom_call.1} parent=1 // pred_check
      _
    $region51: #{tpu_custom_call.1} parent=1 // pred_check_branch
      %121 = sbr.rel (0) target = $region53
    $region52: #{tpu_custom_call.1} parent=1 // pred_region
      %123 = dma.done [#allocation9], 16384
    $region53: #{tpu_custom_call.1} parent=1 // pred_fallthru
      _
    // Predicated region
    $region54: #{tpu_custom_call.1} parent=1 // pred_check
      _
    $region55: #{tpu_custom_call.1} parent=1 // pred_check_branch
      %125 = sbr.rel (0) target = $region57
    $region56: #{tpu_custom_call.1} parent=1 // pred_region
      %127 = dma.done [#allocation9], 64
    $region57: #{tpu_custom_call.1} parent=1 // pred_fallthru
      _
    // Predicated region
    $region58: #{tpu_custom_call.1} parent=1 // pred_check
      _
    $region59: #{tpu_custom_call.1} parent=1 // pred_check_branch
      %129 = sbr.rel (0) target = $region61
    $region60: #{tpu_custom_call.1} parent=1 // pred_region
      %131 = dma.done [#allocation12], 16384
    $region61: #{tpu_custom_call.1} parent=1 // pred_fallthru
      _
    // Predicated region
    $region62: #{tpu_custom_call.1} parent=1 // pred_check
      _
    $region63: #{tpu_custom_call.1} parent=1 // pred_check_branch
      %133 = sbr.rel (0) target = $region65
    $region64: #{tpu_custom_call.1} parent=1 // pred_region
      %135 = dma.done [#allocation12], 4096
    $region65: #{tpu_custom_call.1} parent=1 // pred_fallthru
      _
    %v137 = vld [vmem:[#allocation2] sm:$0x1]
    %v138 = vld [vmem:[#allocation5] sm:$0xff]
    %v139 = vld [vmem:[#allocation5 + $0x8] sm:$0xff]
    %v140 = vld [vmem:[#allocation5 + $0x10] sm:$0xff]
    %v141 = vld [vmem:[#allocation5 + $0x18] sm:$0xff]
    %v142 = vld [vmem:[#allocation5 + $0x20] sm:$0xff]
    %v143 = vld [vmem:[#allocation5 + $0x28] sm:$0xff]
    %v144 = vld [vmem:[#allocation5 + $0x30] sm:$0xff]
    %v145 = vld [vmem:[#allocation5 + $0x38] sm:$0xff]
    %v146 = vld [vmem:[#allocation7] sm:$0xf]
    %v148 = vperm.slane %v146, 0
    %v149 = vperm.slane %v146, 1
    %v150 = vperm.slane %v146, 2
    %v151 = vperm.slane %v146, 3
    %v164 = vunpack.c.l.b16 %v138
    %v165 = vunpack.c.h.b16 %v138
    %v166 = vunpack.c.l.b16 %v139
    %v167 = vunpack.c.h.b16 %v139
    %v168 = vunpack.c.l.b16 %v140
    %v169 = vunpack.c.h.b16 %v140
    %v170 = vunpack.c.l.b16 %v141
    %v171 = vunpack.c.h.b16 %v141
    %v172 = vunpack.c.l.b16 %v142
    %v173 = vunpack.c.h.b16 %v142
    %v174 = vunpack.c.l.b16 %v143
    %v175 = vunpack.c.h.b16 %v143
    %v176 = vunpack.c.l.b16 %v144
    %v177 = vunpack.c.h.b16 %v144
    %v178 = vunpack.c.l.b16 %v145
    %v179 = vunpack.c.h.b16 %v145
    %v180 = vpack.c.b16 %v168, %v164
    %v181 = vpack.c.b16 %v169, %v165
    %v182 = vpack.c.b16 %v170, %v166
    %v183 = vpack.c.b16 %v171, %v167
    %v184 = vpack.c.b16 %v176, %v172
    %v185 = vpack.c.b16 %v177, %v173
    %v186 = vpack.c.b16 %v178, %v174
    %v187 = vpack.c.b16 %v179, %v175
    %vm196 = vcmask 261120
    %v198 = vsel %vm196, %v137, 0
    %200 = vmatpush.bf16.msra.mxu0 0
    %201 = vmatpush.bf16.msra.mxu0 0
    %202 = vmatpush.bf16.msra.mxu0 0
    %203 = vmatpush.bf16.msra.mxu0 0
    %204 = vmatpush.bf16.msra.mxu0 0
    %205 = vmatpush.bf16.msra.mxu0 0
    %206 = vmatpush.bf16.msra.mxu0 %v184
    %207 = vmatpush.bf16.msra.mxu0 %v180
    %208 = vmatmul.bf16.gmra.mxu0 %v198
    %v209 = vpop.f32.mrf.mxu0
    %v210 = vadd.f32 %v148, %v209
    %v211 = vpop.f32.mrf.mxu0
    %212 = vdwg.mxu0
    %213 = vmatpush.bf16.msra.mxu0 0
    %214 = vmatpush.bf16.msra.mxu0 0
    %215 = vmatpush.bf16.msra.mxu0 0
    %216 = vmatpush.bf16.msra.mxu0 0
    %217 = vmatpush.bf16.msra.mxu0 0
    %218 = vmatpush.bf16.msra.mxu0 0
    %219 = vmatpush.bf16.msra.mxu0 %v185
    %220 = vmatpush.bf16.msra.mxu0 %v181
    %221 = vmatmul.bf16.gmra.mxu0 %v198
    %v222 = vpop.f32.mrf.mxu0
    %v223 = vadd.f32 %v149, %v222
    %v224 = vpop.f32.mrf.mxu0
    %225 = vdwg.mxu0
    %226 = vmatpush.bf16.msra.mxu0 0
    %227 = vmatpush.bf16.msra.mxu0 0
    %228 = vmatpush.bf16.msra.mxu0 0
    %229 = vmatpush.bf16.msra.mxu0 0
    %230 = vmatpush.bf16.msra.mxu0 0
    %231 = vmatpush.bf16.msra.mxu0 0
    %232 = vmatpush.bf16.msra.mxu0 %v186
    %233 = vmatpush.bf16.msra.mxu0 %v182
    %234 = vmatmul.bf16.gmra.mxu0 %v198
    %v235 = vpop.f32.mrf.mxu0
    %v236 = vadd.f32 %v150, %v235
    %v237 = vpop.f32.mrf.mxu0
    %238 = vdwg.mxu0
    %239 = vmatpush.bf16.msra.mxu0 0
    %240 = vmatpush.bf16.msra.mxu0 0
    %241 = vmatpush.bf16.msra.mxu0 0
    %242 = vmatpush.bf16.msra.mxu0 0
    %243 = vmatpush.bf16.msra.mxu0 0
    %244 = vmatpush.bf16.msra.mxu0 0
    %245 = vmatpush.bf16.msra.mxu0 %v187
    %246 = vmatpush.bf16.msra.mxu0 %v183
    %247 = vmatmul.bf16.gmra.mxu0 %v198
    %v248 = vpop.f32.mrf.mxu0
    %v249 = vadd.f32 %v151, %v248
    %v250 = vpop.f32.mrf.mxu0
    %251 = vdwg.mxu0
    %v252 = vmax.f32 %v210, 0.0
    %v253 = vmax.f32 %v223, 0.0
    %v254 = vmax.f32 %v236, 0.0
    %v255 = vmax.f32 %v249, 0.0
    %v256 = vpack.c.bf16 %v252, %v252
    %v257 = vpack.c.bf16 %v253, %v253
    %v258 = vpack.c.bf16 %v254, %v254
    %v259 = vpack.c.bf16 %v255, %v255
    %v260 = vld [vmem:[#allocation8] sm:$0xff]
    %v261 = vld [vmem:[#allocation8 + $0x8] sm:$0xff]
    %v262 = vld [vmem:[#allocation8 + $0x10] sm:$0xff]
    %v263 = vld [vmem:[#allocation8 + $0x18] sm:$0xff]
    %v264 = vld [vmem:[#allocation8 + $0x20] sm:$0xff]
    %v265 = vld [vmem:[#allocation8 + $0x28] sm:$0xff]
    %v266 = vld [vmem:[#allocation8 + $0x30] sm:$0xff]
    %v267 = vld [vmem:[#allocation8 + $0x38] sm:$0xff]
    %v268 = vld [vmem:[#allocation8 + $0x40] sm:$0xff]
    %v269 = vld [vmem:[#allocation8 + $0x48] sm:$0xff]
    %v270 = vld [vmem:[#allocation8 + $0x50] sm:$0xff]
    %v271 = vld [vmem:[#allocation8 + $0x58] sm:$0xff]
    %v272 = vld [vmem:[#allocation8 + $0x60] sm:$0xff]
    %v273 = vld [vmem:[#allocation8 + $0x68] sm:$0xff]
    %v274 = vld [vmem:[#allocation8 + $0x70] sm:$0xff]
    %v275 = vld [vmem:[#allocation8 + $0x78] sm:$0xff]
    %v276 = vld [vmem:[#allocation8 + $0x80] sm:$0xff]
    %v277 = vld [vmem:[#allocation8 + $0x88] sm:$0xff]
    %v278 = vld [vmem:[#allocation8 + $0x90] sm:$0xff]
    %v279 = vld [vmem:[#allocation8 + $0x98] sm:$0xff]
    %v280 = vld [vmem:[#allocation8 + $0xa0] sm:$0xff]
    %v281 = vld [vmem:[#allocation8 + $0xa8] sm:$0xff]
    %v282 = vld [vmem:[#allocation8 + $0xb0] sm:$0xff]
    %v283 = vld [vmem:[#allocation8 + $0xb8] sm:$0xff]
    %v284 = vld [vmem:[#allocation8 + $0xc0] sm:$0xff]
    %v285 = vld [vmem:[#allocation8 + $0xc8] sm:$0xff]
    %v286 = vld [vmem:[#allocation8 + $0xd0] sm:$0xff]
    %v287 = vld [vmem:[#allocation8 + $0xd8] sm:$0xff]
    %v288 = vld [vmem:[#allocation8 + $0xe0] sm:$0xff]
    %v289 = vld [vmem:[#allocation8 + $0xe8] sm:$0xff]
    %v290 = vld [vmem:[#allocation8 + $0xf0] sm:$0xff]
    %v291 = vld [vmem:[#allocation8 + $0xf8] sm:$0xff]
    %v292 = vld [vmem:[#allocation8 + $0x100] sm:$0xff]
    %v293 = vld [vmem:[#allocation8 + $0x108] sm:$0xff]
    %v294 = vld [vmem:[#allocation8 + $0x110] sm:$0xff]
    %v295 = vld [vmem:[#allocation8 + $0x118] sm:$0xff]
    %v296 = vld [vmem:[#allocation8 + $0x120] sm:$0xff]
    %v297 = vld [vmem:[#allocation8 + $0x128] sm:$0xff]
    %v298 = vld [vmem:[#allocation8 + $0x130] sm:$0xff]
    %v299 = vld [vmem:[#allocation8 + $0x138] sm:$0xff]
    %v300 = vld [vmem:[#allocation8 + $0x140] sm:$0xff]
    %v301 = vld [vmem:[#allocation8 + $0x148] sm:$0xff]
    %v302 = vld [vmem:[#allocation8 + $0x150] sm:$0xff]
    %v303 = vld [vmem:[#allocation8 + $0x158] sm:$0xff]
    %v304 = vld [vmem:[#allocation8 + $0x160] sm:$0xff]
    %v305 = vld [vmem:[#allocation8 + $0x168] sm:$0xff]
    %v306 = vld [vmem:[#allocation8 + $0x170] sm:$0xff]
    %v307 = vld [vmem:[#allocation8 + $0x178] sm:$0xff]
    %v308 = vld [vmem:[#allocation8 + $0x180] sm:$0xff]
    %v309 = vld [vmem:[#allocation8 + $0x188] sm:$0xff]
    %v310 = vld [vmem:[#allocation8 + $0x190] sm:$0xff]
    %v311 = vld [vmem:[#allocation8 + $0x198] sm:$0xff]
    %v312 = vld [vmem:[#allocation8 + $0x1a0] sm:$0xff]
    %v313 = vld [vmem:[#allocation8 + $0x1a8] sm:$0xff]
    %v314 = vld [vmem:[#allocation8 + $0x1b0] sm:$0xff]
    %v315 = vld [vmem:[#allocation8 + $0x1b8] sm:$0xff]
    %v316 = vld [vmem:[#allocation8 + $0x1c0] sm:$0xff]
    %v317 = vld [vmem:[#allocation8 + $0x1c8] sm:$0xff]
    %v318 = vld [vmem:[#allocation8 + $0x1d0] sm:$0xff]
    %v319 = vld [vmem:[#allocation8 + $0x1d8] sm:$0xff]
    %v320 = vld [vmem:[#allocation8 + $0x1e0] sm:$0xff]
    %v321 = vld [vmem:[#allocation8 + $0x1e8] sm:$0xff]
    %v322 = vld [vmem:[#allocation8 + $0x1f0] sm:$0xff]
    %v323 = vld [vmem:[#allocation8 + $0x1f8] sm:$0xff]
    %v324 = vld [vmem:[#allocation8 + $0x200] sm:$0xff]
    %v325 = vld [vmem:[#allocation8 + $0x208] sm:$0xff]
    %v326 = vld [vmem:[#allocation8 + $0x210] sm:$0xff]
    %v327 = vld [vmem:[#allocation8 + $0x218] sm:$0xff]
    %v328 = vld [vmem:[#allocation8 + $0x220] sm:$0xff]
    %v329 = vld [vmem:[#allocation8 + $0x228] sm:$0xff]
    %v330 = vld [vmem:[#allocation8 + $0x230] sm:$0xff]
    %v331 = vld [vmem:[#allocation8 + $0x238] sm:$0xff]
    %v332 = vld [vmem:[#allocation8 + $0x240] sm:$0xff]
    %v333 = vld [vmem:[#allocation8 + $0x248] sm:$0xff]
    %v334 = vld [vmem:[#allocation8 + $0x250] sm:$0xff]
    %v335 = vld [vmem:[#allocation8 + $0x258] sm:$0xff]
    %v336 = vld [vmem:[#allocation8 + $0x260] sm:$0xff]
    %v337 = vld [vmem:[#allocation8 + $0x268] sm:$0xff]
    %v338 = vld [vmem:[#allocation8 + $0x270] sm:$0xff]
    %v339 = vld [vmem:[#allocation8 + $0x278] sm:$0xff]
    %v340 = vld [vmem:[#allocation8 + $0x280] sm:$0xff]
    %v341 = vld [vmem:[#allocation8 + $0x288] sm:$0xff]
    %v342 = vld [vmem:[#allocation8 + $0x290] sm:$0xff]
    %v343 = vld [vmem:[#allocation8 + $0x298] sm:$0xff]
    %v344 = vld [vmem:[#allocation8 + $0x2a0] sm:$0xff]
    %v345 = vld [vmem:[#allocation8 + $0x2a8] sm:$0xff]
    %v346 = vld [vmem:[#allocation8 + $0x2b0] sm:$0xff]
    %v347 = vld [vmem:[#allocation8 + $0x2b8] sm:$0xff]
    %v348 = vld [vmem:[#allocation8 + $0x2c0] sm:$0xff]
    %v349 = vld [vmem:[#allocation8 + $0x2c8] sm:$0xff]
    %v350 = vld [vmem:[#allocation8 + $0x2d0] sm:$0xff]
    %v351 = vld [vmem:[#allocation8 + $0x2d8] sm:$0xff]
    %v352 = vld [vmem:[#allocation8 + $0x2e0] sm:$0xff]
    %v353 = vld [vmem:[#allocation8 + $0x2e8] sm:$0xff]
    %v354 = vld [vmem:[#allocation8 + $0x2f0] sm:$0xff]
    %v355 = vld [vmem:[#allocation8 + $0x2f8] sm:$0xff]
    %v356 = vld [vmem:[#allocation8 + $0x300] sm:$0xff]
    %v357 = vld [vmem:[#allocation8 + $0x308] sm:$0xff]
    %v358 = vld [vmem:[#allocation8 + $0x310] sm:$0xff]
    %v359 = vld [vmem:[#allocation8 + $0x318] sm:$0xff]
    %v360 = vld [vmem:[#allocation8 + $0x320] sm:$0xff]
    %v361 = vld [vmem:[#allocation8 + $0x328] sm:$0xff]
    %v362 = vld [vmem:[#allocation8 + $0x330] sm:$0xff]
    %v363 = vld [vmem:[#allocation8 + $0x338] sm:$0xff]
    %v364 = vld [vmem:[#allocation8 + $0x340] sm:$0xff]
    %v365 = vld [vmem:[#allocation8 + $0x348] sm:$0xff]
    %v366 = vld [vmem:[#allocation8 + $0x350] sm:$0xff]
    %v367 = vld [vmem:[#allocation8 + $0x358] sm:$0xff]
    %v368 = vld [vmem:[#allocation8 + $0x360] sm:$0xff]
    %v369 = vld [vmem:[#allocation8 + $0x368] sm:$0xff]
    %v370 = vld [vmem:[#allocation8 + $0x370] sm:$0xff]
    %v371 = vld [vmem:[#allocation8 + $0x378] sm:$0xff]
    %v372 = vld [vmem:[#allocation8 + $0x380] sm:$0xff]
    %v373 = vld [vmem:[#allocation8 + $0x388] sm:$0xff]
    %v374 = vld [vmem:[#allocation8 + $0x390] sm:$0xff]
    %v375 = vld [vmem:[#allocation8 + $0x398] sm:$0xff]
    %v376 = vld [vmem:[#allocation8 + $0x3a0] sm:$0xff]
    %v377 = vld [vmem:[#allocation8 + $0x3a8] sm:$0xff]
    %v378 = vld [vmem:[#allocation8 + $0x3b0] sm:$0xff]
    %v379 = vld [vmem:[#allocation8 + $0x3b8] sm:$0xff]
    %v380 = vld [vmem:[#allocation8 + $0x3c0] sm:$0xff]
    %v381 = vld [vmem:[#allocation8 + $0x3c8] sm:$0xff]
    %v382 = vld [vmem:[#allocation8 + $0x3d0] sm:$0xff]
    %v383 = vld [vmem:[#allocation8 + $0x3d8] sm:$0xff]
    %v384 = vld [vmem:[#allocation8 + $0x3e0] sm:$0xff]
    %v385 = vld [vmem:[#allocation8 + $0x3e8] sm:$0xff]
    %v386 = vld [vmem:[#allocation8 + $0x3f0] sm:$0xff]
    %v387 = vld [vmem:[#allocation8 + $0x3f8] sm:$0xff]
    %v388 = vld [vmem:[#allocation10] sm:$0xf]
    %v390 = vperm.slane %v388, 0
    %v391 = vperm.slane %v388, 1
    %v392 = vperm.slane %v388, 2
    %v393 = vperm.slane %v388, 3
    %v526 = vunpack.c.l.b16 %v260
    %v527 = vunpack.c.h.b16 %v260
    %v528 = vunpack.c.l.b16 %v261
    %v529 = vunpack.c.h.b16 %v261
    %v530 = vunpack.c.l.b16 %v262
    %v531 = vunpack.c.h.b16 %v262
    %v532 = vunpack.c.l.b16 %v263
    %v533 = vunpack.c.h.b16 %v263
    %v534 = vunpack.c.l.b16 %v264
    %v535 = vunpack.c.h.b16 %v264
    %v536 = vunpack.c.l.b16 %v265
    %v537 = vunpack.c.h.b16 %v265
    %v538 = vunpack.c.l.b16 %v266
    %v539 = vunpack.c.h.b16 %v266
    %v540 = vunpack.c.l.b16 %v267
    %v541 = vunpack.c.h.b16 %v267
    %v542 = vunpack.c.l.b16 %v268
    %v543 = vunpack.c.h.b16 %v268
    %v544 = vunpack.c.l.b16 %v269
    %v545 = vunpack.c.h.b16 %v269
    %v546 = vunpack.c.l.b16 %v270
    %v547 = vunpack.c.h.b16 %v270
    %v548 = vunpack.c.l.b16 %v271
    %v549 = vunpack.c.h.b16 %v271
    %v550 = vunpack.c.l.b16 %v272
    %v551 = vunpack.c.h.b16 %v272
    %v552 = vunpack.c.l.b16 %v273
    %v553 = vunpack.c.h.b16 %v273
    %v554 = vunpack.c.l.b16 %v274
    %v555 = vunpack.c.h.b16 %v274
    %v556 = vunpack.c.l.b16 %v275
    %v557 = vunpack.c.h.b16 %v275
    %v558 = vunpack.c.l.b16 %v276
    %v559 = vunpack.c.h.b16 %v276
    %v560 = vunpack.c.l.b16 %v277
    %v561 = vunpack.c.h.b16 %v277
    %v562 = vunpack.c.l.b16 %v278
    %v563 = vunpack.c.h.b16 %v278
    %v564 = vunpack.c.l.b16 %v279
    %v565 = vunpack.c.h.b16 %v279
    %v566 = vunpack.c.l.b16 %v280
    %v567 = vunpack.c.h.b16 %v280
    %v568 = vunpack.c.l.b16 %v281
    %v569 = vunpack.c.h.b16 %v281
    %v570 = vunpack.c.l.b16 %v282
    %v571 = vunpack.c.h.b16 %v282
    %v572 = vunpack.c.l.b16 %v283
    %v573 = vunpack.c.h.b16 %v283
    %v574 = vunpack.c.l.b16 %v284
    %v575 = vunpack.c.h.b16 %v284
    %v576 = vunpack.c.l.b16 %v285
    %v577 = vunpack.c.h.b16 %v285
    %v578 = vunpack.c.l.b16 %v286
    %v579 = vunpack.c.h.b16 %v286
    %v580 = vunpack.c.l.b16 %v287
    %v581 = vunpack.c.h.b16 %v287
    %v582 = vunpack.c.l.b16 %v288
    %v583 = vunpack.c.h.b16 %v288
    %v584 = vunpack.c.l.b16 %v289
    %v585 = vunpack.c.h.b16 %v289
    %v586 = vunpack.c.l.b16 %v290
    %v587 = vunpack.c.h.b16 %v290
    %v588 = vunpack.c.l.b16 %v291
    %v589 = vunpack.c.h.b16 %v291
    %v590 = vunpack.c.l.b16 %v292
    %v591 = vunpack.c.h.b16 %v292
    %v592 = vunpack.c.l.b16 %v293
    %v593 = vunpack.c.h.b16 %v293
    %v594 = vunpack.c.l.b16 %v294
    %v595 = vunpack.c.h.b16 %v294
    %v596 = vunpack.c.l.b16 %v295
    %v597 = vunpack.c.h.b16 %v295
    %v598 = vunpack.c.l.b16 %v296
    %v599 = vunpack.c.h.b16 %v296
    %v600 = vunpack.c.l.b16 %v297
    %v601 = vunpack.c.h.b16 %v297
    %v602 = vunpack.c.l.b16 %v298
    %v603 = vunpack.c.h.b16 %v298
    %v604 = vunpack.c.l.b16 %v299
    %v605 = vunpack.c.h.b16 %v299
    %v606 = vunpack.c.l.b16 %v300
    %v607 = vunpack.c.h.b16 %v300
    %v608 = vunpack.c.l.b16 %v301
    %v609 = vunpack.c.h.b16 %v301
    %v610 = vunpack.c.l.b16 %v302
    %v611 = vunpack.c.h.b16 %v302
    %v612 = vunpack.c.l.b16 %v303
    %v613 = vunpack.c.h.b16 %v303
    %v614 = vunpack.c.l.b16 %v304
    %v615 = vunpack.c.h.b16 %v304
    %v616 = vunpack.c.l.b16 %v305
    %v617 = vunpack.c.h.b16 %v305
    %v618 = vunpack.c.l.b16 %v306
    %v619 = vunpack.c.h.b16 %v306
    %v620 = vunpack.c.l.b16 %v307
    %v621 = vunpack.c.h.b16 %v307
    %v622 = vunpack.c.l.b16 %v308
    %v623 = vunpack.c.h.b16 %v308
    %v624 = vunpack.c.l.b16 %v309
    %v625 = vunpack.c.h.b16 %v309
    %v626 = vunpack.c.l.b16 %v310
    %v627 = vunpack.c.h.b16 %v310
    %v628 = vunpack.c.l.b16 %v311
    %v629 = vunpack.c.h.b16 %v311
    %v630 = vunpack.c.l.b16 %v312
    %v631 = vunpack.c.h.b16 %v312
    %v632 = vunpack.c.l.b16 %v313
    %v633 = vunpack.c.h.b16 %v313
    %v634 = vunpack.c.l.b16 %v314
    %v635 = vunpack.c.h.b16 %v314
    %v636 = vunpack.c.l.b16 %v315
    %v637 = vunpack.c.h.b16 %v315
    %v638 = vunpack.c.l.b16 %v316
    %v639 = vunpack.c.h.b16 %v316
    %v640 = vunpack.c.l.b16 %v317
    %v641 = vunpack.c.h.b16 %v317
    %v642 = vunpack.c.l.b16 %v318
    %v643 = vunpack.c.h.b16 %v318
    %v644 = vunpack.c.l.b16 %v319
    %v645 = vunpack.c.h.b16 %v319
    %v646 = vunpack.c.l.b16 %v320
    %v647 = vunpack.c.h.b16 %v320
    %v648 = vunpack.c.l.b16 %v321
    %v649 = vunpack.c.h.b16 %v321
    %v650 = vunpack.c.l.b16 %v322
    %v651 = vunpack.c.h.b16 %v322
    %v652 = vunpack.c.l.b16 %v323
    %v653 = vunpack.c.h.b16 %v323
    %v654 = vunpack.c.l.b16 %v324
    %v655 = vunpack.c.h.b16 %v324
    %v656 = vunpack.c.l.b16 %v325
    %v657 = vunpack.c.h.b16 %v325
    %v658 = vunpack.c.l.b16 %v326
    %v659 = vunpack.c.h.b16 %v326
    %v660 = vunpack.c.l.b16 %v327
    %v661 = vunpack.c.h.b16 %v327
    %v662 = vunpack.c.l.b16 %v328
    %v663 = vunpack.c.h.b16 %v328
    %v664 = vunpack.c.l.b16 %v329
    %v665 = vunpack.c.h.b16 %v329
    %v666 = vunpack.c.l.b16 %v330
    %v667 = vunpack.c.h.b16 %v330
    %v668 = vunpack.c.l.b16 %v331
    %v669 = vunpack.c.h.b16 %v331
    %v670 = vunpack.c.l.b16 %v332
    %v671 = vunpack.c.h.b16 %v332
    %v672 = vunpack.c.l.b16 %v333
    %v673 = vunpack.c.h.b16 %v333
    %v674 = vunpack.c.l.b16 %v334
    %v675 = vunpack.c.h.b16 %v334
    %v676 = vunpack.c.l.b16 %v335
    %v677 = vunpack.c.h.b16 %v335
    %v678 = vunpack.c.l.b16 %v336
    %v679 = vunpack.c.h.b16 %v336
    %v680 = vunpack.c.l.b16 %v337
    %v681 = vunpack.c.h.b16 %v337
    %v682 = vunpack.c.l.b16 %v338
    %v683 = vunpack.c.h.b16 %v338
    %v684 = vunpack.c.l.b16 %v339
    %v685 = vunpack.c.h.b16 %v339
    %v686 = vunpack.c.l.b16 %v340
    %v687 = vunpack.c.h.b16 %v340
    %v688 = vunpack.c.l.b16 %v341
    %v689 = vunpack.c.h.b16 %v341
    %v690 = vunpack.c.l.b16 %v342
    %v691 = vunpack.c.h.b16 %v342
    %v692 = vunpack.c.l.b16 %v343
    %v693 = vunpack.c.h.b16 %v343
    %v694 = vunpack.c.l.b16 %v344
    %v695 = vunpack.c.h.b16 %v344
    %v696 = vunpack.c.l.b16 %v345
    %v697 = vunpack.c.h.b16 %v345
    %v698 = vunpack.c.l.b16 %v346
    %v699 = vunpack.c.h.b16 %v346
    %v700 = vunpack.c.l.b16 %v347
    %v701 = vunpack.c.h.b16 %v347
    %v702 = vunpack.c.l.b16 %v348
    %v703 = vunpack.c.h.b16 %v348
    %v704 = vunpack.c.l.b16 %v349
    %v705 = vunpack.c.h.b16 %v349
    %v706 = vunpack.c.l.b16 %v350
    %v707 = vunpack.c.h.b16 %v350
    %v708 = vunpack.c.l.b16 %v351
    %v709 = vunpack.c.h.b16 %v351
    %v710 = vunpack.c.l.b16 %v352
    %v711 = vunpack.c.h.b16 %v352
    %v712 = vunpack.c.l.b16 %v353
    %v713 = vunpack.c.h.b16 %v353
    %v714 = vunpack.c.l.b16 %v354
    %v715 = vunpack.c.h.b16 %v354
    %v716 = vunpack.c.l.b16 %v355
    %v717 = vunpack.c.h.b16 %v355
    %v718 = vunpack.c.l.b16 %v356
    %v719 = vunpack.c.h.b16 %v356
    %v720 = vunpack.c.l.b16 %v357
    %v721 = vunpack.c.h.b16 %v357
    %v722 = vunpack.c.l.b16 %v358
    %v723 = vunpack.c.h.b16 %v358
    %v724 = vunpack.c.l.b16 %v359
    %v725 = vunpack.c.h.b16 %v359
    %v726 = vunpack.c.l.b16 %v360
    %v727 = vunpack.c.h.b16 %v360
    %v728 = vunpack.c.l.b16 %v361
    %v729 = vunpack.c.h.b16 %v361
    %v730 = vunpack.c.l.b16 %v362
    %v731 = vunpack.c.h.b16 %v362
    %v732 = vunpack.c.l.b16 %v363
    %v733 = vunpack.c.h.b16 %v363
    %v734 = vunpack.c.l.b16 %v364
    %v735 = vunpack.c.h.b16 %v364
    %v736 = vunpack.c.l.b16 %v365
    %v737 = vunpack.c.h.b16 %v365
    %v738 = vunpack.c.l.b16 %v366
    %v739 = vunpack.c.h.b16 %v366
    %v740 = vunpack.c.l.b16 %v367
    %v741 = vunpack.c.h.b16 %v367
    %v742 = vunpack.c.l.b16 %v368
    %v743 = vunpack.c.h.b16 %v368
    %v744 = vunpack.c.l.b16 %v369
    %v745 = vunpack.c.h.b16 %v369
    %v746 = vunpack.c.l.b16 %v370
    %v747 = vunpack.c.h.b16 %v370
    %v748 = vunpack.c.l.b16 %v371
    %v749 = vunpack.c.h.b16 %v371
    %v750 = vunpack.c.l.b16 %v372
    %v751 = vunpack.c.h.b16 %v372
    %v752 = vunpack.c.l.b16 %v373
    %v753 = vunpack.c.h.b16 %v373
    %v754 = vunpack.c.l.b16 %v374
    %v755 = vunpack.c.h.b16 %v374
    %v756 = vunpack.c.l.b16 %v375
    %v757 = vunpack.c.h.b16 %v375
    %v758 = vunpack.c.l.b16 %v376
    %v759 = vunpack.c.h.b16 %v376
    %v760 = vunpack.c.l.b16 %v377
    %v761 = vunpack.c.h.b16 %v377
    %v762 = vunpack.c.l.b16 %v378
    %v763 = vunpack.c.h.b16 %v378
    %v764 = vunpack.c.l.b16 %v379
    %v765 = vunpack.c.h.b16 %v379
    %v766 = vunpack.c.l.b16 %v380
    %v767 = vunpack.c.h.b16 %v380
    %v768 = vunpack.c.l.b16 %v381
    %v769 = vunpack.c.h.b16 %v381
    %v770 = vunpack.c.l.b16 %v382
    %v771 = vunpack.c.h.b16 %v382
    %v772 = vunpack.c.l.b16 %v383
    %v773 = vunpack.c.h.b16 %v383
    %v774 = vunpack.c.l.b16 %v384
    %v775 = vunpack.c.h.b16 %v384
    %v776 = vunpack.c.l.b16 %v385
    %v777 = vunpack.c.h.b16 %v385
    %v778 = vunpack.c.l.b16 %v386
    %v779 = vunpack.c.h.b16 %v386
    %v780 = vunpack.c.l.b16 %v387
    %v781 = vunpack.c.h.b16 %v387
    %v782 = vpack.c.b16 %v530, %v526
    %v783 = vpack.c.b16 %v531, %v527
    %v784 = vpack.c.b16 %v532, %v528
    %v785 = vpack.c.b16 %v533, %v529
    %v786 = vpack.c.b16 %v538, %v534
    %v787 = vpack.c.b16 %v539, %v535
    %v788 = vpack.c.b16 %v540, %v536
    %v789 = vpack.c.b16 %v541, %v537
    %v790 = vpack.c.b16 %v546, %v542
    %v791 = vpack.c.b16 %v547, %v543
    %v792 = vpack.c.b16 %v548, %v544
    %v793 = vpack.c.b16 %v549, %v545
    %v794 = vpack.c.b16 %v554, %v550
    %v795 = vpack.c.b16 %v555, %v551
    %v796 = vpack.c.b16 %v556, %v552
    %v797 = vpack.c.b16 %v557, %v553
    %v798 = vpack.c.b16 %v562, %v558
    %v799 = vpack.c.b16 %v563, %v559
    %v800 = vpack.c.b16 %v564, %v560
    %v801 = vpack.c.b16 %v565, %v561
    %v802 = vpack.c.b16 %v570, %v566
    %v803 = vpack.c.b16 %v571, %v567
    %v804 = vpack.c.b16 %v572, %v568
    %v805 = vpack.c.b16 %v573, %v569
    %v806 = vpack.c.b16 %v578, %v574
    %v807 = vpack.c.b16 %v579, %v575
    %v808 = vpack.c.b16 %v580, %v576
    %v809 = vpack.c.b16 %v581, %v577
    %v810 = vpack.c.b16 %v586, %v582
    %v811 = vpack.c.b16 %v587, %v583
    %v812 = vpack.c.b16 %v588, %v584
    %v813 = vpack.c.b16 %v589, %v585
    %v814 = vpack.c.b16 %v594, %v590
    %v815 = vpack.c.b16 %v595, %v591
    %v816 = vpack.c.b16 %v596, %v592
    %v817 = vpack.c.b16 %v597, %v593
    %v818 = vpack.c.b16 %v602, %v598
    %v819 = vpack.c.b16 %v603, %v599
    %v820 = vpack.c.b16 %v604, %v600
    %v821 = vpack.c.b16 %v605, %v601
    %v822 = vpack.c.b16 %v610, %v606
    %v823 = vpack.c.b16 %v611, %v607
    %v824 = vpack.c.b16 %v612, %v608
    %v825 = vpack.c.b16 %v613, %v609
    %v826 = vpack.c.b16 %v618, %v614
    %v827 = vpack.c.b16 %v619, %v615
    %v828 = vpack.c.b16 %v620, %v616
    %v829 = vpack.c.b16 %v621, %v617
    %v830 = vpack.c.b16 %v626, %v622
    %v831 = vpack.c.b16 %v627, %v623
    %v832 = vpack.c.b16 %v628, %v624
    %v833 = vpack.c.b16 %v629, %v625
    %v834 = vpack.c.b16 %v634, %v630
    %v835 = vpack.c.b16 %v635, %v631
    %v836 = vpack.c.b16 %v636, %v632
    %v837 = vpack.c.b16 %v637, %v633
    %v838 = vpack.c.b16 %v642, %v638
    %v839 = vpack.c.b16 %v643, %v639
    %v840 = vpack.c.b16 %v644, %v640
    %v841 = vpack.c.b16 %v645, %v641
    %v842 = vpack.c.b16 %v650, %v646
    %v843 = vpack.c.b16 %v651, %v647
    %v844 = vpack.c.b16 %v652, %v648
    %v845 = vpack.c.b16 %v653, %v649
    %v846 = vpack.c.b16 %v658, %v654
    %v847 = vpack.c.b16 %v659, %v655
    %v848 = vpack.c.b16 %v660, %v656
    %v849 = vpack.c.b16 %v661, %v657
    %v850 = vpack.c.b16 %v666, %v662
    %v851 = vpack.c.b16 %v667, %v663
    %v852 = vpack.c.b16 %v668, %v664
    %v853 = vpack.c.b16 %v669, %v665
    %v854 = vpack.c.b16 %v674, %v670
    %v855 = vpack.c.b16 %v675, %v671
    %v856 = vpack.c.b16 %v676, %v672
    %v857 = vpack.c.b16 %v677, %v673
    %v858 = vpack.c.b16 %v682, %v678
    %v859 = vpack.c.b16 %v683, %v679
    %v860 = vpack.c.b16 %v684, %v680
    %v861 = vpack.c.b16 %v685, %v681
    %v862 = vpack.c.b16 %v690, %v686
    %v863 = vpack.c.b16 %v691, %v687
    %v864 = vpack.c.b16 %v692, %v688
    %v865 = vpack.c.b16 %v693, %v689
    %v866 = vpack.c.b16 %v698, %v694
    %v867 = vpack.c.b16 %v699, %v695
    %v868 = vpack.c.b16 %v700, %v696
    %v869 = vpack.c.b16 %v701, %v697
    %v870 = vpack.c.b16 %v706, %v702
    %v871 = vpack.c.b16 %v707, %v703
    %v872 = vpack.c.b16 %v708, %v704
    %v873 = vpack.c.b16 %v709, %v705
    %v874 = vpack.c.b16 %v714, %v710
    %v875 = vpack.c.b16 %v715, %v711
    %v876 = vpack.c.b16 %v716, %v712
    %v877 = vpack.c.b16 %v717, %v713
    %v878 = vpack.c.b16 %v722, %v718
    %v879 = vpack.c.b16 %v723, %v719
    %v880 = vpack.c.b16 %v724, %v720
    %v881 = vpack.c.b16 %v725, %v721
    %v882 = vpack.c.b16 %v730, %v726
    %v883 = vpack.c.b16 %v731, %v727
    %v884 = vpack.c.b16 %v732, %v728
    %v885 = vpack.c.b16 %v733, %v729
    %v886 = vpack.c.b16 %v738, %v734
    %v887 = vpack.c.b16 %v739, %v735
    %v888 = vpack.c.b16 %v740, %v736
    %v889 = vpack.c.b16 %v741, %v737
    %v890 = vpack.c.b16 %v746, %v742
    %v891 = vpack.c.b16 %v747, %v743
    %v892 = vpack.c.b16 %v748, %v744
    %v893 = vpack.c.b16 %v749, %v745
    %v894 = vpack.c.b16 %v754, %v750
    %v895 = vpack.c.b16 %v755, %v751
    %v896 = vpack.c.b16 %v756, %v752
    %v897 = vpack.c.b16 %v757, %v753
    %v898 = vpack.c.b16 %v762, %v758
    %v899 = vpack.c.b16 %v763, %v759
    %v900 = vpack.c.b16 %v764, %v760
    %v901 = vpack.c.b16 %v765, %v761
    %v902 = vpack.c.b16 %v770, %v766
    %v903 = vpack.c.b16 %v771, %v767
    %v904 = vpack.c.b16 %v772, %v768
    %v905 = vpack.c.b16 %v773, %v769
    %v906 = vpack.c.b16 %v778, %v774
    %v907 = vpack.c.b16 %v779, %v775
    %v908 = vpack.c.b16 %v780, %v776
    %v909 = vpack.c.b16 %v781, %v777
    %1038 = vmatpush.bf16.msra.mxu0 %v810
    %1039 = vmatpush.bf16.msra.mxu0 %v806
    %1040 = vmatpush.bf16.msra.mxu0 %v802
    %1041 = vmatpush.bf16.msra.mxu0 %v798
    %1042 = vmatpush.bf16.msra.mxu0 %v794
    %1043 = vmatpush.bf16.msra.mxu0 %v790
    %1044 = vmatpush.bf16.msra.mxu0 %v786
    %1045 = vmatpush.bf16.msra.mxu0 %v782
    %1046 = vmatmul.bf16.gmra.mxu0 %v256
    %v1047 = vpop.f32.mrf.mxu0
    %v1048 = vadd.f32 %v390, %v1047
    %v1049 = vpop.f32.mrf.mxu0
    %1050 = vdwg.mxu0
    %1051 = vmatpush.bf16.msra.mxu0 %v842
    %1052 = vmatpush.bf16.msra.mxu0 %v838
    %1053 = vmatpush.bf16.msra.mxu0 %v834
    %1054 = vmatpush.bf16.msra.mxu0 %v830
    %1055 = vmatpush.bf16.msra.mxu0 %v826
    %1056 = vmatpush.bf16.msra.mxu0 %v822
    %1057 = vmatpush.bf16.msra.mxu0 %v818
    %1058 = vmatpush.bf16.msra.mxu0 %v814
    %1059 = vmatmul.bf16.gmra.mxu0 %v257
    %v1060 = vpop.f32.mrf.mxu0
    %v1061 = vadd.f32 %v1048, %v1060
    %v1062 = vpop.f32.mrf.mxu0
    %1063 = vdwg.mxu0
    %1064 = vmatpush.bf16.msra.mxu0 %v874
    %1065 = vmatpush.bf16.msra.mxu0 %v870
    %1066 = vmatpush.bf16.msra.mxu0 %v866
    %1067 = vmatpush.bf16.msra.mxu0 %v862
    %1068 = vmatpush.bf16.msra.mxu0 %v858
    %1069 = vmatpush.bf16.msra.mxu0 %v854
    %1070 = vmatpush.bf16.msra.mxu0 %v850
    %1071 = vmatpush.bf16.msra.mxu0 %v846
    %1072 = vmatmul.bf16.gmra.mxu0 %v258
    %v1073 = vpop.f32.mrf.mxu0
    %v1074 = vadd.f32 %v1061, %v1073
    %v1075 = vpop.f32.mrf.mxu0
    %1076 = vdwg.mxu0
    %1077 = vmatpush.bf16.msra.mxu0 %v906
    %1078 = vmatpush.bf16.msra.mxu0 %v902
    %1079 = vmatpush.bf16.msra.mxu0 %v898
    %1080 = vmatpush.bf16.msra.mxu0 %v894
    %1081 = vmatpush.bf16.msra.mxu0 %v890
    %1082 = vmatpush.bf16.msra.mxu0 %v886
    %1083 = vmatpush.bf16.msra.mxu0 %v882
    %1084 = vmatpush.bf16.msra.mxu0 %v878
    %1085 = vmatmul.bf16.gmra.mxu0 %v259
    %v1086 = vpop.f32.mrf.mxu0
    %v1087 = vadd.f32 %v1074, %v1086
    %v1088 = vpop.f32.mrf.mxu0
    %1089 = vdwg.mxu0
    %1090 = vmatpush.bf16.msra.mxu0 %v811
    %1091 = vmatpush.bf16.msra.mxu0 %v807
    %1092 = vmatpush.bf16.msra.mxu0 %v803
    %1093 = vmatpush.bf16.msra.mxu0 %v799
    %1094 = vmatpush.bf16.msra.mxu0 %v795
    %1095 = vmatpush.bf16.msra.mxu0 %v791
    %1096 = vmatpush.bf16.msra.mxu0 %v787
    %1097 = vmatpush.bf16.msra.mxu0 %v783
    %1098 = vmatmul.bf16.gmra.mxu0 %v256
    %v1099 = vpop.f32.mrf.mxu0
    %v1100 = vadd.f32 %v391, %v1099
    %v1101 = vpop.f32.mrf.mxu0
    %1102 = vdwg.mxu0
    %1103 = vmatpush.bf16.msra.mxu0 %v843
    %1104 = vmatpush.bf16.msra.mxu0 %v839
    %1105 = vmatpush.bf16.msra.mxu0 %v835
    %1106 = vmatpush.bf16.msra.mxu0 %v831
    %1107 = vmatpush.bf16.msra.mxu0 %v827
    %1108 = vmatpush.bf16.msra.mxu0 %v823
    %1109 = vmatpush.bf16.msra.mxu0 %v819
    %1110 = vmatpush.bf16.msra.mxu0 %v815
    %1111 = vmatmul.bf16.gmra.mxu0 %v257
    %v1112 = vpop.f32.mrf.mxu0
    %v1113 = vadd.f32 %v1100, %v1112
    %v1114 = vpop.f32.mrf.mxu0
    %1115 = vdwg.mxu0
    %1116 = vmatpush.bf16.msra.mxu0 %v875
    %1117 = vmatpush.bf16.msra.mxu0 %v871
    %1118 = vmatpush.bf16.msra.mxu0 %v867
    %1119 = vmatpush.bf16.msra.mxu0 %v863
    %1120 = vmatpush.bf16.msra.mxu0 %v859
    %1121 = vmatpush.bf16.msra.mxu0 %v855
    %1122 = vmatpush.bf16.msra.mxu0 %v851
    %1123 = vmatpush.bf16.msra.mxu0 %v847
    %1124 = vmatmul.bf16.gmra.mxu0 %v258
    %v1125 = vpop.f32.mrf.mxu0
    %v1126 = vadd.f32 %v1113, %v1125
    %v1127 = vpop.f32.mrf.mxu0
    %1128 = vdwg.mxu0
    %1129 = vmatpush.bf16.msra.mxu0 %v907
    %1130 = vmatpush.bf16.msra.mxu0 %v903
    %1131 = vmatpush.bf16.msra.mxu0 %v899
    %1132 = vmatpush.bf16.msra.mxu0 %v895
    %1133 = vmatpush.bf16.msra.mxu0 %v891
    %1134 = vmatpush.bf16.msra.mxu0 %v887
    %1135 = vmatpush.bf16.msra.mxu0 %v883
    %1136 = vmatpush.bf16.msra.mxu0 %v879
    %1137 = vmatmul.bf16.gmra.mxu0 %v259
    %v1138 = vpop.f32.mrf.mxu0
    %v1139 = vadd.f32 %v1126, %v1138
    %v1140 = vpop.f32.mrf.mxu0
    %1141 = vdwg.mxu0
    %1142 = vmatpush.bf16.msra.mxu0 %v812
    %1143 = vmatpush.bf16.msra.mxu0 %v808
    %1144 = vmatpush.bf16.msra.mxu0 %v804
    %1145 = vmatpush.bf16.msra.mxu0 %v800
    %1146 = vmatpush.bf16.msra.mxu0 %v796
    %1147 = vmatpush.bf16.msra.mxu0 %v792
    %1148 = vmatpush.bf16.msra.mxu0 %v788
    %1149 = vmatpush.bf16.msra.mxu0 %v784
    %1150 = vmatmul.bf16.gmra.mxu0 %v256
    %v1151 = vpop.f32.mrf.mxu0
    %v1152 = vadd.f32 %v392, %v1151
    %v1153 = vpop.f32.mrf.mxu0
    %1154 = vdwg.mxu0
    %1155 = vmatpush.bf16.msra.mxu0 %v844
    %1156 = vmatpush.bf16.msra.mxu0 %v840
    %1157 = vmatpush.bf16.msra.mxu0 %v836
    %1158 = vmatpush.bf16.msra.mxu0 %v832
    %1159 = vmatpush.bf16.msra.mxu0 %v828
    %1160 = vmatpush.bf16.msra.mxu0 %v824
    %1161 = vmatpush.bf16.msra.mxu0 %v820
    %1162 = vmatpush.bf16.msra.mxu0 %v816
    %1163 = vmatmul.bf16.gmra.mxu0 %v257
    %v1164 = vpop.f32.mrf.mxu0
    %v1165 = vadd.f32 %v1152, %v1164
    %v1166 = vpop.f32.mrf.mxu0
    %1167 = vdwg.mxu0
    %1168 = vmatpush.bf16.msra.mxu0 %v876
    %1169 = vmatpush.bf16.msra.mxu0 %v872
    %1170 = vmatpush.bf16.msra.mxu0 %v868
    %1171 = vmatpush.bf16.msra.mxu0 %v864
    %1172 = vmatpush.bf16.msra.mxu0 %v860
    %1173 = vmatpush.bf16.msra.mxu0 %v856
    %1174 = vmatpush.bf16.msra.mxu0 %v852
    %1175 = vmatpush.bf16.msra.mxu0 %v848
    %1176 = vmatmul.bf16.gmra.mxu0 %v258
    %v1177 = vpop.f32.mrf.mxu0
    %v1178 = vadd.f32 %v1165, %v1177
    %v1179 = vpop.f32.mrf.mxu0
    %1180 = vdwg.mxu0
    %1181 = vmatpush.bf16.msra.mxu0 %v908
    %1182 = vmatpush.bf16.msra.mxu0 %v904
    %1183 = vmatpush.bf16.msra.mxu0 %v900
    %1184 = vmatpush.bf16.msra.mxu0 %v896
    %1185 = vmatpush.bf16.msra.mxu0 %v892
    %1186 = vmatpush.bf16.msra.mxu0 %v888
    %1187 = vmatpush.bf16.msra.mxu0 %v884
    %1188 = vmatpush.bf16.msra.mxu0 %v880
    %1189 = vmatmul.bf16.gmra.mxu0 %v259
    %v1190 = vpop.f32.mrf.mxu0
    %v1191 = vadd.f32 %v1178, %v1190
    %v1192 = vpop.f32.mrf.mxu0
    %1193 = vdwg.mxu0
    %1194 = vmatpush.bf16.msra.mxu0 %v813
    %1195 = vmatpush.bf16.msra.mxu0 %v809
    %1196 = vmatpush.bf16.msra.mxu0 %v805
    %1197 = vmatpush.bf16.msra.mxu0 %v801
    %1198 = vmatpush.bf16.msra.mxu0 %v797
    %1199 = vmatpush.bf16.msra.mxu0 %v793
    %1200 = vmatpush.bf16.msra.mxu0 %v789
    %1201 = vmatpush.bf16.msra.mxu0 %v785
    %1202 = vmatmul.bf16.gmra.mxu0 %v256
    %v1203 = vpop.f32.mrf.mxu0
    %v1204 = vadd.f32 %v393, %v1203
    %v1205 = vpop.f32.mrf.mxu0
    %1206 = vdwg.mxu0
    %1207 = vmatpush.bf16.msra.mxu0 %v845
    %1208 = vmatpush.bf16.msra.mxu0 %v841
    %1209 = vmatpush.bf16.msra.mxu0 %v837
    %1210 = vmatpush.bf16.msra.mxu0 %v833
    %1211 = vmatpush.bf16.msra.mxu0 %v829
    %1212 = vmatpush.bf16.msra.mxu0 %v825
    %1213 = vmatpush.bf16.msra.mxu0 %v821
    %1214 = vmatpush.bf16.msra.mxu0 %v817
    %1215 = vmatmul.bf16.gmra.mxu0 %v257
    %v1216 = vpop.f32.mrf.mxu0
    %v1217 = vadd.f32 %v1204, %v1216
    %v1218 = vpop.f32.mrf.mxu0
    %1219 = vdwg.mxu0
    %1220 = vmatpush.bf16.msra.mxu0 %v877
    %1221 = vmatpush.bf16.msra.mxu0 %v873
    %1222 = vmatpush.bf16.msra.mxu0 %v869
    %1223 = vmatpush.bf16.msra.mxu0 %v865
    %1224 = vmatpush.bf16.msra.mxu0 %v861
    %1225 = vmatpush.bf16.msra.mxu0 %v857
    %1226 = vmatpush.bf16.msra.mxu0 %v853
    %1227 = vmatpush.bf16.msra.mxu0 %v849
    %1228 = vmatmul.bf16.gmra.mxu0 %v258
    %v1229 = vpop.f32.mrf.mxu0
    %v1230 = vadd.f32 %v1217, %v1229
    %v1231 = vpop.f32.mrf.mxu0
    %1232 = vdwg.mxu0
    %1233 = vmatpush.bf16.msra.mxu0 %v909
    %1234 = vmatpush.bf16.msra.mxu0 %v905
    %1235 = vmatpush.bf16.msra.mxu0 %v901
    %1236 = vmatpush.bf16.msra.mxu0 %v897
    %1237 = vmatpush.bf16.msra.mxu0 %v893
    %1238 = vmatpush.bf16.msra.mxu0 %v889
    %1239 = vmatpush.bf16.msra.mxu0 %v885
    %1240 = vmatpush.bf16.msra.mxu0 %v881
    %1241 = vmatmul.bf16.gmra.mxu0 %v259
    %v1242 = vpop.f32.mrf.mxu0
    %v1243 = vadd.f32 %v1230, %v1242
    %v1244 = vpop.f32.mrf.mxu0
    %1245 = vdwg.mxu0
    %v1246 = vmax.f32 %v1087, 0.0
    %v1247 = vmax.f32 %v1139, 0.0
    %v1248 = vmax.f32 %v1191, 0.0
    %v1249 = vmax.f32 %v1243, 0.0
    %v1250 = vpack.c.bf16 %v1246, %v1246
    %v1251 = vpack.c.bf16 %v1247, %v1247
    %v1252 = vpack.c.bf16 %v1248, %v1248
    %v1253 = vpack.c.bf16 %v1249, %v1249
    %v1254 = vld [vmem:[#allocation11] sm:$0xff]
    %v1255 = vld [vmem:[#allocation11 + $0x8] sm:$0xff]
    %v1256 = vld [vmem:[#allocation11 + $0x10] sm:$0xff]
    %v1257 = vld [vmem:[#allocation11 + $0x18] sm:$0xff]
    %v1258 = vld [vmem:[#allocation11 + $0x20] sm:$0xff]
    %v1259 = vld [vmem:[#allocation11 + $0x28] sm:$0xff]
    %v1260 = vld [vmem:[#allocation11 + $0x30] sm:$0xff]
    %v1261 = vld [vmem:[#allocation11 + $0x38] sm:$0xff]
    %v1262 = vld [vmem:[#allocation11 + $0x40] sm:$0xff]
    %v1263 = vld [vmem:[#allocation11 + $0x48] sm:$0xff]
    %v1264 = vld [vmem:[#allocation11 + $0x50] sm:$0xff]
    %v1265 = vld [vmem:[#allocation11 + $0x58] sm:$0xff]
    %v1266 = vld [vmem:[#allocation11 + $0x60] sm:$0xff]
    %v1267 = vld [vmem:[#allocation11 + $0x68] sm:$0xff]
    %v1268 = vld [vmem:[#allocation11 + $0x70] sm:$0xff]
    %v1269 = vld [vmem:[#allocation11 + $0x78] sm:$0xff]
    %v1270 = vld [vmem:[#allocation11 + $0x80] sm:$0xff]
    %v1271 = vld [vmem:[#allocation11 + $0x88] sm:$0xff]
    %v1272 = vld [vmem:[#allocation11 + $0x90] sm:$0xff]
    %v1273 = vld [vmem:[#allocation11 + $0x98] sm:$0xff]
    %v1274 = vld [vmem:[#allocation11 + $0xa0] sm:$0xff]
    %v1275 = vld [vmem:[#allocation11 + $0xa8] sm:$0xff]
    %v1276 = vld [vmem:[#allocation11 + $0xb0] sm:$0xff]
    %v1277 = vld [vmem:[#allocation11 + $0xb8] sm:$0xff]
    %v1278 = vld [vmem:[#allocation11 + $0xc0] sm:$0xff]
    %v1279 = vld [vmem:[#allocation11 + $0xc8] sm:$0xff]
    %v1280 = vld [vmem:[#allocation11 + $0xd0] sm:$0xff]
    %v1281 = vld [vmem:[#allocation11 + $0xd8] sm:$0xff]
    %v1282 = vld [vmem:[#allocation11 + $0xe0] sm:$0xff]
    %v1283 = vld [vmem:[#allocation11 + $0xe8] sm:$0xff]
    %v1284 = vld [vmem:[#allocation11 + $0xf0] sm:$0xff]
    %v1285 = vld [vmem:[#allocation11 + $0xf8] sm:$0xff]
    %v1286 = vld [vmem:[#allocation11 + $0x100] sm:$0xff]
    %v1287 = vld [vmem:[#allocation11 + $0x108] sm:$0xff]
    %v1288 = vld [vmem:[#allocation11 + $0x110] sm:$0xff]
    %v1289 = vld [vmem:[#allocation11 + $0x118] sm:$0xff]
    %v1290 = vld [vmem:[#allocation11 + $0x120] sm:$0xff]
    %v1291 = vld [vmem:[#allocation11 + $0x128] sm:$0xff]
    %v1292 = vld [vmem:[#allocation11 + $0x130] sm:$0xff]
    %v1293 = vld [vmem:[#allocation11 + $0x138] sm:$0xff]
    %v1294 = vld [vmem:[#allocation11 + $0x140] sm:$0xff]
    %v1295 = vld [vmem:[#allocation11 + $0x148] sm:$0xff]
    %v1296 = vld [vmem:[#allocation11 + $0x150] sm:$0xff]
    %v1297 = vld [vmem:[#allocation11 + $0x158] sm:$0xff]
    %v1298 = vld [vmem:[#allocation11 + $0x160] sm:$0xff]
    %v1299 = vld [vmem:[#allocation11 + $0x168] sm:$0xff]
    %v1300 = vld [vmem:[#allocation11 + $0x170] sm:$0xff]
    %v1301 = vld [vmem:[#allocation11 + $0x178] sm:$0xff]
    %v1302 = vld [vmem:[#allocation11 + $0x180] sm:$0xff]
    %v1303 = vld [vmem:[#allocation11 + $0x188] sm:$0xff]
    %v1304 = vld [vmem:[#allocation11 + $0x190] sm:$0xff]
    %v1305 = vld [vmem:[#allocation11 + $0x198] sm:$0xff]
    %v1306 = vld [vmem:[#allocation11 + $0x1a0] sm:$0xff]
    %v1307 = vld [vmem:[#allocation11 + $0x1a8] sm:$0xff]
    %v1308 = vld [vmem:[#allocation11 + $0x1b0] sm:$0xff]
    %v1309 = vld [vmem:[#allocation11 + $0x1b8] sm:$0xff]
    %v1310 = vld [vmem:[#allocation11 + $0x1c0] sm:$0xff]
    %v1311 = vld [vmem:[#allocation11 + $0x1c8] sm:$0xff]
    %v1312 = vld [vmem:[#allocation11 + $0x1d0] sm:$0xff]
    %v1313 = vld [vmem:[#allocation11 + $0x1d8] sm:$0xff]
    %v1314 = vld [vmem:[#allocation11 + $0x1e0] sm:$0xff]
    %v1315 = vld [vmem:[#allocation11 + $0x1e8] sm:$0xff]
    %v1316 = vld [vmem:[#allocation11 + $0x1f0] sm:$0xff]
    %v1317 = vld [vmem:[#allocation11 + $0x1f8] sm:$0xff]
    %v1318 = vld [vmem:[#allocation11 + $0x200] sm:$0xff]
    %v1319 = vld [vmem:[#allocation11 + $0x208] sm:$0xff]
    %v1320 = vld [vmem:[#allocation11 + $0x210] sm:$0xff]
    %v1321 = vld [vmem:[#allocation11 + $0x218] sm:$0xff]
    %v1322 = vld [vmem:[#allocation11 + $0x220] sm:$0xff]
    %v1323 = vld [vmem:[#allocation11 + $0x228] sm:$0xff]
    %v1324 = vld [vmem:[#allocation11 + $0x230] sm:$0xff]
    %v1325 = vld [vmem:[#allocation11 + $0x238] sm:$0xff]
    %v1326 = vld [vmem:[#allocation11 + $0x240] sm:$0xff]
    %v1327 = vld [vmem:[#allocation11 + $0x248] sm:$0xff]
    %v1328 = vld [vmem:[#allocation11 + $0x250] sm:$0xff]
    %v1329 = vld [vmem:[#allocation11 + $0x258] sm:$0xff]
    %v1330 = vld [vmem:[#allocation11 + $0x260] sm:$0xff]
    %v1331 = vld [vmem:[#allocation11 + $0x268] sm:$0xff]
    %v1332 = vld [vmem:[#allocation11 + $0x270] sm:$0xff]
    %v1333 = vld [vmem:[#allocation11 + $0x278] sm:$0xff]
    %v1334 = vld [vmem:[#allocation11 + $0x280] sm:$0xff]
    %v1335 = vld [vmem:[#allocation11 + $0x288] sm:$0xff]
    %v1336 = vld [vmem:[#allocation11 + $0x290] sm:$0xff]
    %v1337 = vld [vmem:[#allocation11 + $0x298] sm:$0xff]
    %v1338 = vld [vmem:[#allocation11 + $0x2a0] sm:$0xff]
    %v1339 = vld [vmem:[#allocation11 + $0x2a8] sm:$0xff]
    %v1340 = vld [vmem:[#allocation11 + $0x2b0] sm:$0xff]
    %v1341 = vld [vmem:[#allocation11 + $0x2b8] sm:$0xff]
    %v1342 = vld [vmem:[#allocation11 + $0x2c0] sm:$0xff]
    %v1343 = vld [vmem:[#allocation11 + $0x2c8] sm:$0xff]
    %v1344 = vld [vmem:[#allocation11 + $0x2d0] sm:$0xff]
    %v1345 = vld [vmem:[#allocation11 + $0x2d8] sm:$0xff]
    %v1346 = vld [vmem:[#allocation11 + $0x2e0] sm:$0xff]
    %v1347 = vld [vmem:[#allocation11 + $0x2e8] sm:$0xff]
    %v1348 = vld [vmem:[#allocation11 + $0x2f0] sm:$0xff]
    %v1349 = vld [vmem:[#allocation11 + $0x2f8] sm:$0xff]
    %v1350 = vld [vmem:[#allocation11 + $0x300] sm:$0xff]
    %v1351 = vld [vmem:[#allocation11 + $0x308] sm:$0xff]
    %v1352 = vld [vmem:[#allocation11 + $0x310] sm:$0xff]
    %v1353 = vld [vmem:[#allocation11 + $0x318] sm:$0xff]
    %v1354 = vld [vmem:[#allocation11 + $0x320] sm:$0xff]
    %v1355 = vld [vmem:[#allocation11 + $0x328] sm:$0xff]
    %v1356 = vld [vmem:[#allocation11 + $0x330] sm:$0xff]
    %v1357 = vld [vmem:[#allocation11 + $0x338] sm:$0xff]
    %v1358 = vld [vmem:[#allocation11 + $0x340] sm:$0xff]
    %v1359 = vld [vmem:[#allocation11 + $0x348] sm:$0xff]
    %v1360 = vld [vmem:[#allocation11 + $0x350] sm:$0xff]
    %v1361 = vld [vmem:[#allocation11 + $0x358] sm:$0xff]
    %v1362 = vld [vmem:[#allocation11 + $0x360] sm:$0xff]
    %v1363 = vld [vmem:[#allocation11 + $0x368] sm:$0xff]
    %v1364 = vld [vmem:[#allocation11 + $0x370] sm:$0xff]
    %v1365 = vld [vmem:[#allocation11 + $0x378] sm:$0xff]
    %v1366 = vld [vmem:[#allocation11 + $0x380] sm:$0xff]
    %v1367 = vld [vmem:[#allocation11 + $0x388] sm:$0xff]
    %v1368 = vld [vmem:[#allocation11 + $0x390] sm:$0xff]
    %v1369 = vld [vmem:[#allocation11 + $0x398] sm:$0xff]
    %v1370 = vld [vmem:[#allocation11 + $0x3a0] sm:$0xff]
    %v1371 = vld [vmem:[#allocation11 + $0x3a8] sm:$0xff]
    %v1372 = vld [vmem:[#allocation11 + $0x3b0] sm:$0xff]
    %v1373 = vld [vmem:[#allocation11 + $0x3b8] sm:$0xff]
    %v1374 = vld [vmem:[#allocation11 + $0x3c0] sm:$0xff]
    %v1375 = vld [vmem:[#allocation11 + $0x3c8] sm:$0xff]
    %v1376 = vld [vmem:[#allocation11 + $0x3d0] sm:$0xff]
    %v1377 = vld [vmem:[#allocation11 + $0x3d8] sm:$0xff]
    %v1378 = vld [vmem:[#allocation11 + $0x3e0] sm:$0xff]
    %v1379 = vld [vmem:[#allocation11 + $0x3e8] sm:$0xff]
    %v1380 = vld [vmem:[#allocation11 + $0x3f0] sm:$0xff]
    %v1381 = vld [vmem:[#allocation11 + $0x3f8] sm:$0xff]
    %v1382 = vld [vmem:[%s6] sm:$0xf]
    %v1384 = vperm.slane %v1382, 0
    %v1385 = vperm.slane %v1382, 1
    %v1386 = vperm.slane %v1382, 2
    %v1387 = vperm.slane %v1382, 3
    %v1520 = vunpack.c.l.b16 %v1254
    %v1521 = vunpack.c.h.b16 %v1254
    %v1522 = vunpack.c.l.b16 %v1255
    %v1523 = vunpack.c.h.b16 %v1255
    %v1524 = vunpack.c.l.b16 %v1256
    %v1525 = vunpack.c.h.b16 %v1256
    %v1526 = vunpack.c.l.b16 %v1257
    %v1527 = vunpack.c.h.b16 %v1257
    %v1528 = vunpack.c.l.b16 %v1258
    %v1529 = vunpack.c.h.b16 %v1258
    %v1530 = vunpack.c.l.b16 %v1259
    %v1531 = vunpack.c.h.b16 %v1259
    %v1532 = vunpack.c.l.b16 %v1260
    %v1533 = vunpack.c.h.b16 %v1260
    %v1534 = vunpack.c.l.b16 %v1261
    %v1535 = vunpack.c.h.b16 %v1261
    %v1536 = vunpack.c.l.b16 %v1262
    %v1537 = vunpack.c.h.b16 %v1262
    %v1538 = vunpack.c.l.b16 %v1263
    %v1539 = vunpack.c.h.b16 %v1263
    %v1540 = vunpack.c.l.b16 %v1264
    %v1541 = vunpack.c.h.b16 %v1264
    %v1542 = vunpack.c.l.b16 %v1265
    %v1543 = vunpack.c.h.b16 %v1265
    %v1544 = vunpack.c.l.b16 %v1266
    %v1545 = vunpack.c.h.b16 %v1266
    %v1546 = vunpack.c.l.b16 %v1267
    %v1547 = vunpack.c.h.b16 %v1267
    %v1548 = vunpack.c.l.b16 %v1268
    %v1549 = vunpack.c.h.b16 %v1268
    %v1550 = vunpack.c.l.b16 %v1269
    %v1551 = vunpack.c.h.b16 %v1269
    %v1552 = vunpack.c.l.b16 %v1270
    %v1553 = vunpack.c.h.b16 %v1270
    %v1554 = vunpack.c.l.b16 %v1271
    %v1555 = vunpack.c.h.b16 %v1271
    %v1556 = vunpack.c.l.b16 %v1272
    %v1557 = vunpack.c.h.b16 %v1272
    %v1558 = vunpack.c.l.b16 %v1273
    %v1559 = vunpack.c.h.b16 %v1273
    %v1560 = vunpack.c.l.b16 %v1274
    %v1561 = vunpack.c.h.b16 %v1274
    %v1562 = vunpack.c.l.b16 %v1275
    %v1563 = vunpack.c.h.b16 %v1275
    %v1564 = vunpack.c.l.b16 %v1276
    %v1565 = vunpack.c.h.b16 %v1276
    %v1566 = vunpack.c.l.b16 %v1277
    %v1567 = vunpack.c.h.b16 %v1277
    %v1568 = vunpack.c.l.b16 %v1278
    %v1569 = vunpack.c.h.b16 %v1278
    %v1570 = vunpack.c.l.b16 %v1279
    %v1571 = vunpack.c.h.b16 %v1279
    %v1572 = vunpack.c.l.b16 %v1280
    %v1573 = vunpack.c.h.b16 %v1280
    %v1574 = vunpack.c.l.b16 %v1281
    %v1575 = vunpack.c.h.b16 %v1281
    %v1576 = vunpack.c.l.b16 %v1282
    %v1577 = vunpack.c.h.b16 %v1282
    %v1578 = vunpack.c.l.b16 %v1283
    %v1579 = vunpack.c.h.b16 %v1283
    %v1580 = vunpack.c.l.b16 %v1284
    %v1581 = vunpack.c.h.b16 %v1284
    %v1582 = vunpack.c.l.b16 %v1285
    %v1583 = vunpack.c.h.b16 %v1285
    %v1584 = vunpack.c.l.b16 %v1286
    %v1585 = vunpack.c.h.b16 %v1286
    %v1586 = vunpack.c.l.b16 %v1287
    %v1587 = vunpack.c.h.b16 %v1287
    %v1588 = vunpack.c.l.b16 %v1288
    %v1589 = vunpack.c.h.b16 %v1288
    %v1590 = vunpack.c.l.b16 %v1289
    %v1591 = vunpack.c.h.b16 %v1289
    %v1592 = vunpack.c.l.b16 %v1290
    %v1593 = vunpack.c.h.b16 %v1290
    %v1594 = vunpack.c.l.b16 %v1291
    %v1595 = vunpack.c.h.b16 %v1291
    %v1596 = vunpack.c.l.b16 %v1292
    %v1597 = vunpack.c.h.b16 %v1292
    %v1598 = vunpack.c.l.b16 %v1293
    %v1599 = vunpack.c.h.b16 %v1293
    %v1600 = vunpack.c.l.b16 %v1294
    %v1601 = vunpack.c.h.b16 %v1294
    %v1602 = vunpack.c.l.b16 %v1295
    %v1603 = vunpack.c.h.b16 %v1295
    %v1604 = vunpack.c.l.b16 %v1296
    %v1605 = vunpack.c.h.b16 %v1296
    %v1606 = vunpack.c.l.b16 %v1297
    %v1607 = vunpack.c.h.b16 %v1297
    %v1608 = vunpack.c.l.b16 %v1298
    %v1609 = vunpack.c.h.b16 %v1298
    %v1610 = vunpack.c.l.b16 %v1299
    %v1611 = vunpack.c.h.b16 %v1299
    %v1612 = vunpack.c.l.b16 %v1300
    %v1613 = vunpack.c.h.b16 %v1300
    %v1614 = vunpack.c.l.b16 %v1301
    %v1615 = vunpack.c.h.b16 %v1301
    %v1616 = vunpack.c.l.b16 %v1302
    %v1617 = vunpack.c.h.b16 %v1302
    %v1618 = vunpack.c.l.b16 %v1303
    %v1619 = vunpack.c.h.b16 %v1303
    %v1620 = vunpack.c.l.b16 %v1304
    %v1621 = vunpack.c.h.b16 %v1304
    %v1622 = vunpack.c.l.b16 %v1305
    %v1623 = vunpack.c.h.b16 %v1305
    %v1624 = vunpack.c.l.b16 %v1306
    %v1625 = vunpack.c.h.b16 %v1306
    %v1626 = vunpack.c.l.b16 %v1307
    %v1627 = vunpack.c.h.b16 %v1307
    %v1628 = vunpack.c.l.b16 %v1308
    %v1629 = vunpack.c.h.b16 %v1308
    %v1630 = vunpack.c.l.b16 %v1309
    %v1631 = vunpack.c.h.b16 %v1309
    %v1632 = vunpack.c.l.b16 %v1310
    %v1633 = vunpack.c.h.b16 %v1310
    %v1634 = vunpack.c.l.b16 %v1311
    %v1635 = vunpack.c.h.b16 %v1311
    %v1636 = vunpack.c.l.b16 %v1312
    %v1637 = vunpack.c.h.b16 %v1312
    %v1638 = vunpack.c.l.b16 %v1313
    %v1639 = vunpack.c.h.b16 %v1313
    %v1640 = vunpack.c.l.b16 %v1314
    %v1641 = vunpack.c.h.b16 %v1314
    %v1642 = vunpack.c.l.b16 %v1315
    %v1643 = vunpack.c.h.b16 %v1315
    %v1644 = vunpack.c.l.b16 %v1316
    %v1645 = vunpack.c.h.b16 %v1316
    %v1646 = vunpack.c.l.b16 %v1317
    %v1647 = vunpack.c.h.b16 %v1317
    %v1648 = vunpack.c.l.b16 %v1318
    %v1649 = vunpack.c.h.b16 %v1318
    %v1650 = vunpack.c.l.b16 %v1319
    %v1651 = vunpack.c.h.b16 %v1319
    %v1652 = vunpack.c.l.b16 %v1320
    %v1653 = vunpack.c.h.b16 %v1320
    %v1654 = vunpack.c.l.b16 %v1321
    %v1655 = vunpack.c.h.b16 %v1321
    %v1656 = vunpack.c.l.b16 %v1322
    %v1657 = vunpack.c.h.b16 %v1322
    %v1658 = vunpack.c.l.b16 %v1323
    %v1659 = vunpack.c.h.b16 %v1323
    %v1660 = vunpack.c.l.b16 %v1324
    %v1661 = vunpack.c.h.b16 %v1324
    %v1662 = vunpack.c.l.b16 %v1325
    %v1663 = vunpack.c.h.b16 %v1325
    %v1664 = vunpack.c.l.b16 %v1326
    %v1665 = vunpack.c.h.b16 %v1326
    %v1666 = vunpack.c.l.b16 %v1327
    %v1667 = vunpack.c.h.b16 %v1327
    %v1668 = vunpack.c.l.b16 %v1328
    %v1669 = vunpack.c.h.b16 %v1328
    %v1670 = vunpack.c.l.b16 %v1329
    %v1671 = vunpack.c.h.b16 %v1329
    %v1672 = vunpack.c.l.b16 %v1330
    %v1673 = vunpack.c.h.b16 %v1330
    %v1674 = vunpack.c.l.b16 %v1331
    %v1675 = vunpack.c.h.b16 %v1331
    %v1676 = vunpack.c.l.b16 %v1332
    %v1677 = vunpack.c.h.b16 %v1332
    %v1678 = vunpack.c.l.b16 %v1333
    %v1679 = vunpack.c.h.b16 %v1333
    %v1680 = vunpack.c.l.b16 %v1334
    %v1681 = vunpack.c.h.b16 %v1334
    %v1682 = vunpack.c.l.b16 %v1335
    %v1683 = vunpack.c.h.b16 %v1335
    %v1684 = vunpack.c.l.b16 %v1336
    %v1685 = vunpack.c.h.b16 %v1336
    %v1686 = vunpack.c.l.b16 %v1337
    %v1687 = vunpack.c.h.b16 %v1337
    %v1688 = vunpack.c.l.b16 %v1338
    %v1689 = vunpack.c.h.b16 %v1338
    %v1690 = vunpack.c.l.b16 %v1339
    %v1691 = vunpack.c.h.b16 %v1339
    %v1692 = vunpack.c.l.b16 %v1340
    %v1693 = vunpack.c.h.b16 %v1340
    %v1694 = vunpack.c.l.b16 %v1341
    %v1695 = vunpack.c.h.b16 %v1341
    %v1696 = vunpack.c.l.b16 %v1342
    %v1697 = vunpack.c.h.b16 %v1342
    %v1698 = vunpack.c.l.b16 %v1343
    %v1699 = vunpack.c.h.b16 %v1343
    %v1700 = vunpack.c.l.b16 %v1344
    %v1701 = vunpack.c.h.b16 %v1344
    %v1702 = vunpack.c.l.b16 %v1345
    %v1703 = vunpack.c.h.b16 %v1345
    %v1704 = vunpack.c.l.b16 %v1346
    %v1705 = vunpack.c.h.b16 %v1346
    %v1706 = vunpack.c.l.b16 %v1347
    %v1707 = vunpack.c.h.b16 %v1347
    %v1708 = vunpack.c.l.b16 %v1348
    %v1709 = vunpack.c.h.b16 %v1348
    %v1710 = vunpack.c.l.b16 %v1349
    %v1711 = vunpack.c.h.b16 %v1349
    %v1712 = vunpack.c.l.b16 %v1350
    %v1713 = vunpack.c.h.b16 %v1350
    %v1714 = vunpack.c.l.b16 %v1351
    %v1715 = vunpack.c.h.b16 %v1351
    %v1716 = vunpack.c.l.b16 %v1352
    %v1717 = vunpack.c.h.b16 %v1352
    %v1718 = vunpack.c.l.b16 %v1353
    %v1719 = vunpack.c.h.b16 %v1353
    %v1720 = vunpack.c.l.b16 %v1354
    %v1721 = vunpack.c.h.b16 %v1354
    %v1722 = vunpack.c.l.b16 %v1355
    %v1723 = vunpack.c.h.b16 %v1355
    %v1724 = vunpack.c.l.b16 %v1356
    %v1725 = vunpack.c.h.b16 %v1356
    %v1726 = vunpack.c.l.b16 %v1357
    %v1727 = vunpack.c.h.b16 %v1357
    %v1728 = vunpack.c.l.b16 %v1358
    %v1729 = vunpack.c.h.b16 %v1358
    %v1730 = vunpack.c.l.b16 %v1359
    %v1731 = vunpack.c.h.b16 %v1359
    %v1732 = vunpack.c.l.b16 %v1360
    %v1733 = vunpack.c.h.b16 %v1360
    %v1734 = vunpack.c.l.b16 %v1361
    %v1735 = vunpack.c.h.b16 %v1361
    %v1736 = vunpack.c.l.b16 %v1362
    %v1737 = vunpack.c.h.b16 %v1362
    %v1738 = vunpack.c.l.b16 %v1363
    %v1739 = vunpack.c.h.b16 %v1363
    %v1740 = vunpack.c.l.b16 %v1364
    %v1741 = vunpack.c.h.b16 %v1364
    %v1742 = vunpack.c.l.b16 %v1365
    %v1743 = vunpack.c.h.b16 %v1365
    %v1744 = vunpack.c.l.b16 %v1366
    %v1745 = vunpack.c.h.b16 %v1366
    %v1746 = vunpack.c.l.b16 %v1367
    %v1747 = vunpack.c.h.b16 %v1367
    %v1748 = vunpack.c.l.b16 %v1368
    %v1749 = vunpack.c.h.b16 %v1368
    %v1750 = vunpack.c.l.b16 %v1369
    %v1751 = vunpack.c.h.b16 %v1369
    %v1752 = vunpack.c.l.b16 %v1370
    %v1753 = vunpack.c.h.b16 %v1370
    %v1754 = vunpack.c.l.b16 %v1371
    %v1755 = vunpack.c.h.b16 %v1371
    %v1756 = vunpack.c.l.b16 %v1372
    %v1757 = vunpack.c.h.b16 %v1372
    %v1758 = vunpack.c.l.b16 %v1373
    %v1759 = vunpack.c.h.b16 %v1373
    %v1760 = vunpack.c.l.b16 %v1374
    %v1761 = vunpack.c.h.b16 %v1374
    %v1762 = vunpack.c.l.b16 %v1375
    %v1763 = vunpack.c.h.b16 %v1375
    %v1764 = vunpack.c.l.b16 %v1376
    %v1765 = vunpack.c.h.b16 %v1376
    %v1766 = vunpack.c.l.b16 %v1377
    %v1767 = vunpack.c.h.b16 %v1377
    %v1768 = vunpack.c.l.b16 %v1378
    %v1769 = vunpack.c.h.b16 %v1378
    %v1770 = vunpack.c.l.b16 %v1379
    %v1771 = vunpack.c.h.b16 %v1379
    %v1772 = vunpack.c.l.b16 %v1380
    %v1773 = vunpack.c.h.b16 %v1380
    %v1774 = vunpack.c.l.b16 %v1381
    %v1775 = vunpack.c.h.b16 %v1381
    %v1776 = vpack.c.b16 %v1524, %v1520
    %v1777 = vpack.c.b16 %v1525, %v1521
    %v1778 = vpack.c.b16 %v1526, %v1522
    %v1779 = vpack.c.b16 %v1527, %v1523
    %v1780 = vpack.c.b16 %v1532, %v1528
    %v1781 = vpack.c.b16 %v1533, %v1529
    %v1782 = vpack.c.b16 %v1534, %v1530
    %v1783 = vpack.c.b16 %v1535, %v1531
    %v1784 = vpack.c.b16 %v1540, %v1536
    %v1785 = vpack.c.b16 %v1541, %v1537
    %v1786 = vpack.c.b16 %v1542, %v1538
    %v1787 = vpack.c.b16 %v1543, %v1539
    %v1788 = vpack.c.b16 %v1548, %v1544
    %v1789 = vpack.c.b16 %v1549, %v1545
    %v1790 = vpack.c.b16 %v1550, %v1546
    %v1791 = vpack.c.b16 %v1551, %v1547
    %v1792 = vpack.c.b16 %v1556, %v1552
    %v1793 = vpack.c.b16 %v1557, %v1553
    %v1794 = vpack.c.b16 %v1558, %v1554
    %v1795 = vpack.c.b16 %v1559, %v1555
    %v1796 = vpack.c.b16 %v1564, %v1560
    %v1797 = vpack.c.b16 %v1565, %v1561
    %v1798 = vpack.c.b16 %v1566, %v1562
    %v1799 = vpack.c.b16 %v1567, %v1563
    %v1800 = vpack.c.b16 %v1572, %v1568
    %v1801 = vpack.c.b16 %v1573, %v1569
    %v1802 = vpack.c.b16 %v1574, %v1570
    %v1803 = vpack.c.b16 %v1575, %v1571
    %v1804 = vpack.c.b16 %v1580, %v1576
    %v1805 = vpack.c.b16 %v1581, %v1577
    %v1806 = vpack.c.b16 %v1582, %v1578
    %v1807 = vpack.c.b16 %v1583, %v1579
    %v1808 = vpack.c.b16 %v1588, %v1584
    %v1809 = vpack.c.b16 %v1589, %v1585
    %v1810 = vpack.c.b16 %v1590, %v1586
    %v1811 = vpack.c.b16 %v1591, %v1587
    %v1812 = vpack.c.b16 %v1596, %v1592
    %v1813 = vpack.c.b16 %v1597, %v1593
    %v1814 = vpack.c.b16 %v1598, %v1594
    %v1815 = vpack.c.b16 %v1599, %v1595
    %v1816 = vpack.c.b16 %v1604, %v1600
    %v1817 = vpack.c.b16 %v1605, %v1601
    %v1818 = vpack.c.b16 %v1606, %v1602
    %v1819 = vpack.c.b16 %v1607, %v1603
    %v1820 = vpack.c.b16 %v1612, %v1608
    %v1821 = vpack.c.b16 %v1613, %v1609
    %v1822 = vpack.c.b16 %v1614, %v1610
    %v1823 = vpack.c.b16 %v1615, %v1611
    %v1824 = vpack.c.b16 %v1620, %v1616
    %v1825 = vpack.c.b16 %v1621, %v1617
    %v1826 = vpack.c.b16 %v1622, %v1618
    %v1827 = vpack.c.b16 %v1623, %v1619
    %v1828 = vpack.c.b16 %v1628, %v1624
    %v1829 = vpack.c.b16 %v1629, %v1625
    %v1830 = vpack.c.b16 %v1630, %v1626
    %v1831 = vpack.c.b16 %v1631, %v1627
    %v1832 = vpack.c.b16 %v1636, %v1632
    %v1833 = vpack.c.b16 %v1637, %v1633
    %v1834 = vpack.c.b16 %v1638, %v1634
    %v1835 = vpack.c.b16 %v1639, %v1635
    %v1836 = vpack.c.b16 %v1644, %v1640
    %v1837 = vpack.c.b16 %v1645, %v1641
    %v1838 = vpack.c.b16 %v1646, %v1642
    %v1839 = vpack.c.b16 %v1647, %v1643
    %v1840 = vpack.c.b16 %v1652, %v1648
    %v1841 = vpack.c.b16 %v1653, %v1649
    %v1842 = vpack.c.b16 %v1654, %v1650
    %v1843 = vpack.c.b16 %v1655, %v1651
    %v1844 = vpack.c.b16 %v1660, %v1656
    %v1845 = vpack.c.b16 %v1661, %v1657
    %v1846 = vpack.c.b16 %v1662, %v1658
    %v1847 = vpack.c.b16 %v1663, %v1659
    %v1848 = vpack.c.b16 %v1668, %v1664
    %v1849 = vpack.c.b16 %v1669, %v1665
    %v1850 = vpack.c.b16 %v1670, %v1666
    %v1851 = vpack.c.b16 %v1671, %v1667
    %v1852 = vpack.c.b16 %v1676, %v1672
    %v1853 = vpack.c.b16 %v1677, %v1673
    %v1854 = vpack.c.b16 %v1678, %v1674
    %v1855 = vpack.c.b16 %v1679, %v1675
    %v1856 = vpack.c.b16 %v1684, %v1680
    %v1857 = vpack.c.b16 %v1685, %v1681
    %v1858 = vpack.c.b16 %v1686, %v1682
    %v1859 = vpack.c.b16 %v1687, %v1683
    %v1860 = vpack.c.b16 %v1692, %v1688
    %v1861 = vpack.c.b16 %v1693, %v1689
    %v1862 = vpack.c.b16 %v1694, %v1690
    %v1863 = vpack.c.b16 %v1695, %v1691
    %v1864 = vpack.c.b16 %v1700, %v1696
    %v1865 = vpack.c.b16 %v1701, %v1697
    %v1866 = vpack.c.b16 %v1702, %v1698
    %v1867 = vpack.c.b16 %v1703, %v1699
    %v1868 = vpack.c.b16 %v1708, %v1704
    %v1869 = vpack.c.b16 %v1709, %v1705
    %v1870 = vpack.c.b16 %v1710, %v1706
    %v1871 = vpack.c.b16 %v1711, %v1707
    %v1872 = vpack.c.b16 %v1716, %v1712
    %v1873 = vpack.c.b16 %v1717, %v1713
    %v1874 = vpack.c.b16 %v1718, %v1714
    %v1875 = vpack.c.b16 %v1719, %v1715
    %v1876 = vpack.c.b16 %v1724, %v1720
    %v1877 = vpack.c.b16 %v1725, %v1721
    %v1878 = vpack.c.b16 %v1726, %v1722
    %v1879 = vpack.c.b16 %v1727, %v1723
    %v1880 = vpack.c.b16 %v1732, %v1728
    %v1881 = vpack.c.b16 %v1733, %v1729
    %v1882 = vpack.c.b16 %v1734, %v1730
    %v1883 = vpack.c.b16 %v1735, %v1731
    %v1884 = vpack.c.b16 %v1740, %v1736
    %v1885 = vpack.c.b16 %v1741, %v1737
    %v1886 = vpack.c.b16 %v1742, %v1738
    %v1887 = vpack.c.b16 %v1743, %v1739
    %v1888 = vpack.c.b16 %v1748, %v1744
    %v1889 = vpack.c.b16 %v1749, %v1745
    %v1890 = vpack.c.b16 %v1750, %v1746
    %v1891 = vpack.c.b16 %v1751, %v1747
    %v1892 = vpack.c.b16 %v1756, %v1752
    %v1893 = vpack.c.b16 %v1757, %v1753
    %v1894 = vpack.c.b16 %v1758, %v1754
    %v1895 = vpack.c.b16 %v1759, %v1755
    %v1896 = vpack.c.b16 %v1764, %v1760
    %v1897 = vpack.c.b16 %v1765, %v1761
    %v1898 = vpack.c.b16 %v1766, %v1762
    %v1899 = vpack.c.b16 %v1767, %v1763
    %v1900 = vpack.c.b16 %v1772, %v1768
    %v1901 = vpack.c.b16 %v1773, %v1769
    %v1902 = vpack.c.b16 %v1774, %v1770
    %v1903 = vpack.c.b16 %v1775, %v1771
    %2032 = vmatpush.bf16.msra.mxu0 %v1804
    %2033 = vmatpush.bf16.msra.mxu0 %v1800
    %2034 = vmatpush.bf16.msra.mxu0 %v1796
    %2035 = vmatpush.bf16.msra.mxu0 %v1792
    %2036 = vmatpush.bf16.msra.mxu0 %v1788
    %2037 = vmatpush.bf16.msra.mxu0 %v1784
    %2038 = vmatpush.bf16.msra.mxu0 %v1780
    %2039 = vmatpush.bf16.msra.mxu0 %v1776
    %2040 = vmatmul.bf16.gmra.mxu0 %v1250
    %v2041 = vpop.f32.mrf.mxu0
    %v2042 = vadd.f32 %v1384, %v2041
    %v2043 = vpop.f32.mrf.mxu0
    %2044 = vdwg.mxu0
    %2045 = vmatpush.bf16.msra.mxu0 %v1836
    %2046 = vmatpush.bf16.msra.mxu0 %v1832
    %2047 = vmatpush.bf16.msra.mxu0 %v1828
    %2048 = vmatpush.bf16.msra.mxu0 %v1824
    %2049 = vmatpush.bf16.msra.mxu0 %v1820
    %2050 = vmatpush.bf16.msra.mxu0 %v1816
    %2051 = vmatpush.bf16.msra.mxu0 %v1812
    %2052 = vmatpush.bf16.msra.mxu0 %v1808
    %2053 = vmatmul.bf16.gmra.mxu0 %v1251
    %v2054 = vpop.f32.mrf.mxu0
    %v2055 = vadd.f32 %v2042, %v2054
    %v2056 = vpop.f32.mrf.mxu0
    %2057 = vdwg.mxu0
    %2058 = vmatpush.bf16.msra.mxu0 %v1868
    %2059 = vmatpush.bf16.msra.mxu0 %v1864
    %2060 = vmatpush.bf16.msra.mxu0 %v1860
    %2061 = vmatpush.bf16.msra.mxu0 %v1856
    %2062 = vmatpush.bf16.msra.mxu0 %v1852
    %2063 = vmatpush.bf16.msra.mxu0 %v1848
    %2064 = vmatpush.bf16.msra.mxu0 %v1844
    %2065 = vmatpush.bf16.msra.mxu0 %v1840
    %2066 = vmatmul.bf16.gmra.mxu0 %v1252
    %v2067 = vpop.f32.mrf.mxu0
    %v2068 = vadd.f32 %v2055, %v2067
    %v2069 = vpop.f32.mrf.mxu0
    %2070 = vdwg.mxu0
    %2071 = vmatpush.bf16.msra.mxu0 %v1900
    %2072 = vmatpush.bf16.msra.mxu0 %v1896
    %2073 = vmatpush.bf16.msra.mxu0 %v1892
    %2074 = vmatpush.bf16.msra.mxu0 %v1888
    %2075 = vmatpush.bf16.msra.mxu0 %v1884
    %2076 = vmatpush.bf16.msra.mxu0 %v1880
    %2077 = vmatpush.bf16.msra.mxu0 %v1876
    %2078 = vmatpush.bf16.msra.mxu0 %v1872
    %2079 = vmatmul.bf16.gmra.mxu0 %v1253
    %v2080 = vpop.f32.mrf.mxu0
    %v2081 = vadd.f32 %v2068, %v2080
    %v2082 = vpop.f32.mrf.mxu0
    %2083 = vdwg.mxu0
    %2084 = vmatpush.bf16.msra.mxu0 %v1805
    %2085 = vmatpush.bf16.msra.mxu0 %v1801
    %2086 = vmatpush.bf16.msra.mxu0 %v1797
    %2087 = vmatpush.bf16.msra.mxu0 %v1793
    %2088 = vmatpush.bf16.msra.mxu0 %v1789
    %2089 = vmatpush.bf16.msra.mxu0 %v1785
    %2090 = vmatpush.bf16.msra.mxu0 %v1781
    %2091 = vmatpush.bf16.msra.mxu0 %v1777
    %2092 = vmatmul.bf16.gmra.mxu0 %v1250
    %v2093 = vpop.f32.mrf.mxu0
    %v2094 = vadd.f32 %v1385, %v2093
    %v2095 = vpop.f32.mrf.mxu0
    %2096 = vdwg.mxu0
    %2097 = vmatpush.bf16.msra.mxu0 %v1837
    %2098 = vmatpush.bf16.msra.mxu0 %v1833
    %2099 = vmatpush.bf16.msra.mxu0 %v1829
    %2100 = vmatpush.bf16.msra.mxu0 %v1825
    %2101 = vmatpush.bf16.msra.mxu0 %v1821
    %2102 = vmatpush.bf16.msra.mxu0 %v1817
    %2103 = vmatpush.bf16.msra.mxu0 %v1813
    %2104 = vmatpush.bf16.msra.mxu0 %v1809
    %2105 = vmatmul.bf16.gmra.mxu0 %v1251
    %v2106 = vpop.f32.mrf.mxu0
    %v2107 = vadd.f32 %v2094, %v2106
    %v2108 = vpop.f32.mrf.mxu0
    %2109 = vdwg.mxu0
    %2110 = vmatpush.bf16.msra.mxu0 %v1869
    %2111 = vmatpush.bf16.msra.mxu0 %v1865
    %2112 = vmatpush.bf16.msra.mxu0 %v1861
    %2113 = vmatpush.bf16.msra.mxu0 %v1857
    %2114 = vmatpush.bf16.msra.mxu0 %v1853
    %2115 = vmatpush.bf16.msra.mxu0 %v1849
    %2116 = vmatpush.bf16.msra.mxu0 %v1845
    %2117 = vmatpush.bf16.msra.mxu0 %v1841
    %2118 = vmatmul.bf16.gmra.mxu0 %v1252
    %v2119 = vpop.f32.mrf.mxu0
    %v2120 = vadd.f32 %v2107, %v2119
    %v2121 = vpop.f32.mrf.mxu0
    %2122 = vdwg.mxu0
    %2123 = vmatpush.bf16.msra.mxu0 %v1901
    %2124 = vmatpush.bf16.msra.mxu0 %v1897
    %2125 = vmatpush.bf16.msra.mxu0 %v1893
    %2126 = vmatpush.bf16.msra.mxu0 %v1889
    %2127 = vmatpush.bf16.msra.mxu0 %v1885
    %2128 = vmatpush.bf16.msra.mxu0 %v1881
    %2129 = vmatpush.bf16.msra.mxu0 %v1877
    %2130 = vmatpush.bf16.msra.mxu0 %v1873
    %2131 = vmatmul.bf16.gmra.mxu0 %v1253
    %v2132 = vpop.f32.mrf.mxu0
    %v2133 = vadd.f32 %v2120, %v2132
    %v2134 = vpop.f32.mrf.mxu0
    %2135 = vdwg.mxu0
    %2136 = vmatpush.bf16.msra.mxu0 %v1806
    %2137 = vmatpush.bf16.msra.mxu0 %v1802
    %2138 = vmatpush.bf16.msra.mxu0 %v1798
    %2139 = vmatpush.bf16.msra.mxu0 %v1794
    %2140 = vmatpush.bf16.msra.mxu0 %v1790
    %2141 = vmatpush.bf16.msra.mxu0 %v1786
    %2142 = vmatpush.bf16.msra.mxu0 %v1782
    %2143 = vmatpush.bf16.msra.mxu0 %v1778
    %2144 = vmatmul.bf16.gmra.mxu0 %v1250
    %v2145 = vpop.f32.mrf.mxu0
    %v2146 = vadd.f32 %v1386, %v2145
    %v2147 = vpop.f32.mrf.mxu0
    %2148 = vdwg.mxu0
    %2149 = vmatpush.bf16.msra.mxu0 %v1838
    %2150 = vmatpush.bf16.msra.mxu0 %v1834
    %2151 = vmatpush.bf16.msra.mxu0 %v1830
    %2152 = vmatpush.bf16.msra.mxu0 %v1826
    %2153 = vmatpush.bf16.msra.mxu0 %v1822
    %2154 = vmatpush.bf16.msra.mxu0 %v1818
    %2155 = vmatpush.bf16.msra.mxu0 %v1814
    %2156 = vmatpush.bf16.msra.mxu0 %v1810
    %2157 = vmatmul.bf16.gmra.mxu0 %v1251
    %v2158 = vpop.f32.mrf.mxu0
    %v2159 = vadd.f32 %v2146, %v2158
    %v2160 = vpop.f32.mrf.mxu0
    %2161 = vdwg.mxu0
    %2162 = vmatpush.bf16.msra.mxu0 %v1870
    %2163 = vmatpush.bf16.msra.mxu0 %v1866
    %2164 = vmatpush.bf16.msra.mxu0 %v1862
    %2165 = vmatpush.bf16.msra.mxu0 %v1858
    %2166 = vmatpush.bf16.msra.mxu0 %v1854
    %2167 = vmatpush.bf16.msra.mxu0 %v1850
    %2168 = vmatpush.bf16.msra.mxu0 %v1846
    %2169 = vmatpush.bf16.msra.mxu0 %v1842
    %2170 = vmatmul.bf16.gmra.mxu0 %v1252
    %v2171 = vpop.f32.mrf.mxu0
    %v2172 = vadd.f32 %v2159, %v2171
    %v2173 = vpop.f32.mrf.mxu0
    %2174 = vdwg.mxu0
    %2175 = vmatpush.bf16.msra.mxu0 %v1902
    %2176 = vmatpush.bf16.msra.mxu0 %v1898
    %2177 = vmatpush.bf16.msra.mxu0 %v1894
    %2178 = vmatpush.bf16.msra.mxu0 %v1890
    %2179 = vmatpush.bf16.msra.mxu0 %v1886
    %2180 = vmatpush.bf16.msra.mxu0 %v1882
    %2181 = vmatpush.bf16.msra.mxu0 %v1878
    %2182 = vmatpush.bf16.msra.mxu0 %v1874
    %2183 = vmatmul.bf16.gmra.mxu0 %v1253
    %v2184 = vpop.f32.mrf.mxu0
    %v2185 = vadd.f32 %v2172, %v2184
    %v2186 = vpop.f32.mrf.mxu0
    %2187 = vdwg.mxu0
    %2188 = vmatpush.bf16.msra.mxu0 %v1807
    %2189 = vmatpush.bf16.msra.mxu0 %v1803
    %2190 = vmatpush.bf16.msra.mxu0 %v1799
    %2191 = vmatpush.bf16.msra.mxu0 %v1795
    %2192 = vmatpush.bf16.msra.mxu0 %v1791
    %2193 = vmatpush.bf16.msra.mxu0 %v1787
    %2194 = vmatpush.bf16.msra.mxu0 %v1783
    %2195 = vmatpush.bf16.msra.mxu0 %v1779
    %2196 = vmatmul.bf16.gmra.mxu0 %v1250
    %v2197 = vpop.f32.mrf.mxu0
    %v2198 = vadd.f32 %v1387, %v2197
    %v2199 = vpop.f32.mrf.mxu0
    %2200 = vdwg.mxu0
    %2201 = vmatpush.bf16.msra.mxu0 %v1839
    %2202 = vmatpush.bf16.msra.mxu0 %v1835
    %2203 = vmatpush.bf16.msra.mxu0 %v1831
    %2204 = vmatpush.bf16.msra.mxu0 %v1827
    %2205 = vmatpush.bf16.msra.mxu0 %v1823
    %2206 = vmatpush.bf16.msra.mxu0 %v1819
    %2207 = vmatpush.bf16.msra.mxu0 %v1815
    %2208 = vmatpush.bf16.msra.mxu0 %v1811
    %2209 = vmatmul.bf16.gmra.mxu0 %v1251
    %v2210 = vpop.f32.mrf.mxu0
    %v2211 = vadd.f32 %v2198, %v2210
    %v2212 = vpop.f32.mrf.mxu0
    %2213 = vdwg.mxu0
    %2214 = vmatpush.bf16.msra.mxu0 %v1871
    %2215 = vmatpush.bf16.msra.mxu0 %v1867
    %2216 = vmatpush.bf16.msra.mxu0 %v1863
    %2217 = vmatpush.bf16.msra.mxu0 %v1859
    %2218 = vmatpush.bf16.msra.mxu0 %v1855
    %2219 = vmatpush.bf16.msra.mxu0 %v1851
    %2220 = vmatpush.bf16.msra.mxu0 %v1847
    %2221 = vmatpush.bf16.msra.mxu0 %v1843
    %2222 = vmatmul.bf16.gmra.mxu0 %v1252
    %v2223 = vpop.f32.mrf.mxu0
    %v2224 = vadd.f32 %v2211, %v2223
    %v2225 = vpop.f32.mrf.mxu0
    %2226 = vdwg.mxu0
    %2227 = vmatpush.bf16.msra.mxu0 %v1903
    %2228 = vmatpush.bf16.msra.mxu0 %v1899
    %2229 = vmatpush.bf16.msra.mxu0 %v1895
    %2230 = vmatpush.bf16.msra.mxu0 %v1891
    %2231 = vmatpush.bf16.msra.mxu0 %v1887
    %2232 = vmatpush.bf16.msra.mxu0 %v1883
    %2233 = vmatpush.bf16.msra.mxu0 %v1879
    %2234 = vmatpush.bf16.msra.mxu0 %v1875
    %2235 = vmatmul.bf16.gmra.mxu0 %v1253
    %v2236 = vpop.f32.mrf.mxu0
    %v2237 = vadd.f32 %v2224, %v2236
    %v2238 = vpop.f32.mrf.mxu0
    %2239 = vdwg.mxu0
    %v2240 = vmax.f32 %v2081, 0.0
    %v2241 = vmax.f32 %v2133, 0.0
    %v2242 = vmax.f32 %v2185, 0.0
    %v2243 = vmax.f32 %v2237, 0.0
    %v2244 = vpack.c.bf16 %v2240, %v2240
    %v2245 = vpack.c.bf16 %v2241, %v2241
    %v2246 = vpack.c.bf16 %v2242, %v2242
    %v2247 = vpack.c.bf16 %v2243, %v2243
    %v2248 = vld [vmem:[#allocation13] sm:$0xf]
    %v2249 = vld [vmem:[#allocation13 + $0x4] sm:$0xf]
    %v2250 = vld [vmem:[#allocation13 + $0x8] sm:$0xf]
    %v2251 = vld [vmem:[#allocation13 + $0xc] sm:$0xf]
    %v2252 = vld [vmem:[#allocation13 + $0x10] sm:$0xf]
    %v2253 = vld [vmem:[#allocation13 + $0x14] sm:$0xf]
    %v2254 = vld [vmem:[#allocation13 + $0x18] sm:$0xf]
    %v2255 = vld [vmem:[#allocation13 + $0x1c] sm:$0xf]
    %v2256 = vld [vmem:[#allocation13 + $0x20] sm:$0xf]
    %v2257 = vld [vmem:[#allocation13 + $0x24] sm:$0xf]
    %v2258 = vld [vmem:[#allocation13 + $0x28] sm:$0xf]
    %v2259 = vld [vmem:[#allocation13 + $0x2c] sm:$0xf]
    %v2260 = vld [vmem:[#allocation13 + $0x30] sm:$0xf]
    %v2261 = vld [vmem:[#allocation13 + $0x34] sm:$0xf]
    %v2262 = vld [vmem:[#allocation13 + $0x38] sm:$0xf]
    %v2263 = vld [vmem:[#allocation13 + $0x3c] sm:$0xf]
    %v2264 = vld [vmem:[#allocation13 + $0x40] sm:$0xf]
    %v2265 = vld [vmem:[#allocation13 + $0x44] sm:$0xf]
    %v2266 = vld [vmem:[#allocation13 + $0x48] sm:$0xf]
    %v2267 = vld [vmem:[#allocation13 + $0x4c] sm:$0xf]
    %v2268 = vld [vmem:[#allocation13 + $0x50] sm:$0xf]
    %v2269 = vld [vmem:[#allocation13 + $0x54] sm:$0xf]
    %v2270 = vld [vmem:[#allocation13 + $0x58] sm:$0xf]
    %v2271 = vld [vmem:[#allocation13 + $0x5c] sm:$0xf]
    %v2272 = vld [vmem:[#allocation13 + $0x60] sm:$0xf]
    %v2273 = vld [vmem:[#allocation13 + $0x64] sm:$0xf]
    %v2274 = vld [vmem:[#allocation13 + $0x68] sm:$0xf]
    %v2275 = vld [vmem:[#allocation13 + $0x6c] sm:$0xf]
    %v2276 = vld [vmem:[#allocation13 + $0x70] sm:$0xf]
    %v2277 = vld [vmem:[#allocation13 + $0x74] sm:$0xf]
    %v2278 = vld [vmem:[#allocation13 + $0x78] sm:$0xf]
    %v2279 = vld [vmem:[#allocation13 + $0x7c] sm:$0xf]
    %v2280 = vld [vmem:[#allocation13 + $0x80] sm:$0xf]
    %v2281 = vld [vmem:[#allocation13 + $0x84] sm:$0xf]
    %v2282 = vld [vmem:[#allocation13 + $0x88] sm:$0xf]
    %v2283 = vld [vmem:[#allocation13 + $0x8c] sm:$0xf]
    %v2284 = vld [vmem:[#allocation13 + $0x90] sm:$0xf]
    %v2285 = vld [vmem:[#allocation13 + $0x94] sm:$0xf]
    %v2286 = vld [vmem:[#allocation13 + $0x98] sm:$0xf]
    %v2287 = vld [vmem:[#allocation13 + $0x9c] sm:$0xf]
    %v2288 = vld [vmem:[#allocation13 + $0xa0] sm:$0xf]
    %v2289 = vld [vmem:[#allocation13 + $0xa4] sm:$0xf]
    %v2290 = vld [vmem:[#allocation13 + $0xa8] sm:$0xf]
    %v2291 = vld [vmem:[#allocation13 + $0xac] sm:$0xf]
    %v2292 = vld [vmem:[#allocation13 + $0xb0] sm:$0xf]
    %v2293 = vld [vmem:[#allocation13 + $0xb4] sm:$0xf]
    %v2294 = vld [vmem:[#allocation13 + $0xb8] sm:$0xf]
    %v2295 = vld [vmem:[#allocation13 + $0xbc] sm:$0xf]
    %v2296 = vld [vmem:[#allocation13 + $0xc0] sm:$0xf]
    %v2297 = vld [vmem:[#allocation13 + $0xc4] sm:$0xf]
    %v2298 = vld [vmem:[#allocation13 + $0xc8] sm:$0xf]
    %v2299 = vld [vmem:[#allocation13 + $0xcc] sm:$0xf]
    %v2300 = vld [vmem:[#allocation13 + $0xd0] sm:$0xf]
    %v2301 = vld [vmem:[#allocation13 + $0xd4] sm:$0xf]
    %v2302 = vld [vmem:[#allocation13 + $0xd8] sm:$0xf]
    %v2303 = vld [vmem:[#allocation13 + $0xdc] sm:$0xf]
    %v2304 = vld [vmem:[#allocation13 + $0xe0] sm:$0xf]
    %v2305 = vld [vmem:[#allocation13 + $0xe4] sm:$0xf]
    %v2306 = vld [vmem:[#allocation13 + $0xe8] sm:$0xf]
    %v2307 = vld [vmem:[#allocation13 + $0xec] sm:$0xf]
    %v2308 = vld [vmem:[#allocation13 + $0xf0] sm:$0xf]
    %v2309 = vld [vmem:[#allocation13 + $0xf4] sm:$0xf]
    %v2310 = vld [vmem:[#allocation13 + $0xf8] sm:$0xf]
    %v2311 = vld [vmem:[#allocation13 + $0xfc] sm:$0xf]
    %v2312 = vld [vmem:[%s8] sm:$0x1]
    %v2314 = vperm.slane %v2312, 0
    %v2380 = vunpack.c.l.b16 %v2248
    %v2381 = vunpack.c.l.b16 %v2249
    %v2382 = vunpack.c.l.b16 %v2250
    %v2383 = vunpack.c.l.b16 %v2251
    %v2384 = vunpack.c.l.b16 %v2252
    %v2385 = vunpack.c.l.b16 %v2253
    %v2386 = vunpack.c.l.b16 %v2254
    %v2387 = vunpack.c.l.b16 %v2255
    %v2388 = vunpack.c.l.b16 %v2256
    %v2389 = vunpack.c.l.b16 %v2257
    %v2390 = vunpack.c.l.b16 %v2258
    %v2391 = vunpack.c.l.b16 %v2259
    %v2392 = vunpack.c.l.b16 %v2260
    %v2393 = vunpack.c.l.b16 %v2261
    %v2394 = vunpack.c.l.b16 %v2262
    %v2395 = vunpack.c.l.b16 %v2263
    %v2396 = vunpack.c.l.b16 %v2264
    %v2397 = vunpack.c.l.b16 %v2265
    %v2398 = vunpack.c.l.b16 %v2266
    %v2399 = vunpack.c.l.b16 %v2267
    %v2400 = vunpack.c.l.b16 %v2268
    %v2401 = vunpack.c.l.b16 %v2269
    %v2402 = vunpack.c.l.b16 %v2270
    %v2403 = vunpack.c.l.b16 %v2271
    %v2404 = vunpack.c.l.b16 %v2272
    %v2405 = vunpack.c.l.b16 %v2273
    %v2406 = vunpack.c.l.b16 %v2274
    %v2407 = vunpack.c.l.b16 %v2275
    %v2408 = vunpack.c.l.b16 %v2276
    %v2409 = vunpack.c.l.b16 %v2277
    %v2410 = vunpack.c.l.b16 %v2278
    %v2411 = vunpack.c.l.b16 %v2279
    %v2412 = vunpack.c.l.b16 %v2280
    %v2413 = vunpack.c.l.b16 %v2281
    %v2414 = vunpack.c.l.b16 %v2282
    %v2415 = vunpack.c.l.b16 %v2283
    %v2416 = vunpack.c.l.b16 %v2284
    %v2417 = vunpack.c.l.b16 %v2285
    %v2418 = vunpack.c.l.b16 %v2286
    %v2419 = vunpack.c.l.b16 %v2287
    %v2420 = vunpack.c.l.b16 %v2288
    %v2421 = vunpack.c.l.b16 %v2289
    %v2422 = vunpack.c.l.b16 %v2290
    %v2423 = vunpack.c.l.b16 %v2291
    %v2424 = vunpack.c.l.b16 %v2292
    %v2425 = vunpack.c.l.b16 %v2293
    %v2426 = vunpack.c.l.b16 %v2294
    %v2427 = vunpack.c.l.b16 %v2295
    %v2428 = vunpack.c.l.b16 %v2296
    %v2429 = vunpack.c.l.b16 %v2297
    %v2430 = vunpack.c.l.b16 %v2298
    %v2431 = vunpack.c.l.b16 %v2299
    %v2432 = vunpack.c.l.b16 %v2300
    %v2433 = vunpack.c.l.b16 %v2301
    %v2434 = vunpack.c.l.b16 %v2302
    %v2435 = vunpack.c.l.b16 %v2303
    %v2436 = vunpack.c.l.b16 %v2304
    %v2437 = vunpack.c.l.b16 %v2305
    %v2438 = vunpack.c.l.b16 %v2306
    %v2439 = vunpack.c.l.b16 %v2307
    %v2440 = vunpack.c.l.b16 %v2308
    %v2441 = vunpack.c.l.b16 %v2309
    %v2442 = vunpack.c.l.b16 %v2310
    %v2443 = vunpack.c.l.b16 %v2311
    %v2444 = vpack.c.b16 %v2381, %v2380
    %v2445 = vpack.c.b16 %v2383, %v2382
    %v2446 = vpack.c.b16 %v2385, %v2384
    %v2447 = vpack.c.b16 %v2387, %v2386
    %v2448 = vpack.c.b16 %v2389, %v2388
    %v2449 = vpack.c.b16 %v2391, %v2390
    %v2450 = vpack.c.b16 %v2393, %v2392
    %v2451 = vpack.c.b16 %v2395, %v2394
    %v2452 = vpack.c.b16 %v2397, %v2396
    %v2453 = vpack.c.b16 %v2399, %v2398
    %v2454 = vpack.c.b16 %v2401, %v2400
    %v2455 = vpack.c.b16 %v2403, %v2402
    %v2456 = vpack.c.b16 %v2405, %v2404
    %v2457 = vpack.c.b16 %v2407, %v2406
    %v2458 = vpack.c.b16 %v2409, %v2408
    %v2459 = vpack.c.b16 %v2411, %v2410
    %v2460 = vpack.c.b16 %v2413, %v2412
    %v2461 = vpack.c.b16 %v2415, %v2414
    %v2462 = vpack.c.b16 %v2417, %v2416
    %v2463 = vpack.c.b16 %v2419, %v2418
    %v2464 = vpack.c.b16 %v2421, %v2420
    %v2465 = vpack.c.b16 %v2423, %v2422
    %v2466 = vpack.c.b16 %v2425, %v2424
    %v2467 = vpack.c.b16 %v2427, %v2426
    %v2468 = vpack.c.b16 %v2429, %v2428
    %v2469 = vpack.c.b16 %v2431, %v2430
    %v2470 = vpack.c.b16 %v2433, %v2432
    %v2471 = vpack.c.b16 %v2435, %v2434
    %v2472 = vpack.c.b16 %v2437, %v2436
    %v2473 = vpack.c.b16 %v2439, %v2438
    %v2474 = vpack.c.b16 %v2441, %v2440
    %v2475 = vpack.c.b16 %v2443, %v2442
    %2508 = vmatpush.bf16.msra.mxu0 %v2451
    %2509 = vmatpush.bf16.msra.mxu0 %v2450
    %2510 = vmatpush.bf16.msra.mxu0 %v2449
    %2511 = vmatpush.bf16.msra.mxu0 %v2448
    %2512 = vmatpush.bf16.msra.mxu0 %v2447
    %2513 = vmatpush.bf16.msra.mxu0 %v2446
    %2514 = vmatpush.bf16.msra.mxu0 %v2445
    %2515 = vmatpush.bf16.msra.mxu0 %v2444
    %2516 = vmatmul.bf16.gmra.mxu0 %v2244
    %v2517 = vpop.f32.mrf.mxu0
    %v2518 = vadd.f32 %v2314, %v2517
    %v2519 = vpop.f32.mrf.mxu0
    %2520 = vdwg.mxu0
    %2521 = vmatpush.bf16.msra.mxu0 %v2459
    %2522 = vmatpush.bf16.msra.mxu0 %v2458
    %2523 = vmatpush.bf16.msra.mxu0 %v2457
    %2524 = vmatpush.bf16.msra.mxu0 %v2456
    %2525 = vmatpush.bf16.msra.mxu0 %v2455
    %2526 = vmatpush.bf16.msra.mxu0 %v2454
    %2527 = vmatpush.bf16.msra.mxu0 %v2453
    %2528 = vmatpush.bf16.msra.mxu0 %v2452
    %2529 = vmatmul.bf16.gmra.mxu0 %v2245
    %v2530 = vpop.f32.mrf.mxu0
    %v2531 = vadd.f32 %v2518, %v2530
    %v2532 = vpop.f32.mrf.mxu0
    %2533 = vdwg.mxu0
    %2534 = vmatpush.bf16.msra.mxu0 %v2467
    %2535 = vmatpush.bf16.msra.mxu0 %v2466
    %2536 = vmatpush.bf16.msra.mxu0 %v2465
    %2537 = vmatpush.bf16.msra.mxu0 %v2464
    %2538 = vmatpush.bf16.msra.mxu0 %v2463
    %2539 = vmatpush.bf16.msra.mxu0 %v2462
    %2540 = vmatpush.bf16.msra.mxu0 %v2461
    %2541 = vmatpush.bf16.msra.mxu0 %v2460
    %2542 = vmatmul.bf16.gmra.mxu0 %v2246
    %v2543 = vpop.f32.mrf.mxu0
    %v2544 = vadd.f32 %v2531, %v2543
    %v2545 = vpop.f32.mrf.mxu0
    %2546 = vdwg.mxu0
    %2547 = vmatpush.bf16.msra.mxu0 %v2475
    %2548 = vmatpush.bf16.msra.mxu0 %v2474
    %2549 = vmatpush.bf16.msra.mxu0 %v2473
    %2550 = vmatpush.bf16.msra.mxu0 %v2472
    %2551 = vmatpush.bf16.msra.mxu0 %v2471
    %2552 = vmatpush.bf16.msra.mxu0 %v2470
    %2553 = vmatpush.bf16.msra.mxu0 %v2469
    %2554 = vmatpush.bf16.msra.mxu0 %v2468
    %2555 = vmatmul.bf16.gmra.mxu0 %v2247
    %v2556 = vpop.f32.mrf.mxu0
    %v2557 = vadd.f32 %v2544, %v2556
    %v2558 = vpop.f32.mrf.mxu0
    %2559 = vdwg.mxu0
    %2560 = vst [vmem:[#allocation14] sm:$0x3] %v2557
    // Predicated region
    $region66: #{tpu_custom_call.1} parent=1 // pred_check
      _
    $region67: #{tpu_custom_call.1} parent=1 // pred_check_branch
      %2562 = sbr.rel (0) target = $region69
    $region68: #{tpu_custom_call.1} parent=1 // pred_region
      %2564 = vsyncadd [#allocation4], 0
      %s2566 = sshll.u32 [#allocation14], 4
      %s2567 = int_to_ptr.vmem [resolvable:$true] %s2566
      %s2568 = sshll.u32 %s9, 4
      %s2569 = int_to_ptr.hbm [resolvable:$true] %s2568
      %2571 = dma.vmem_to_hbm [thread:$0]  %s2567, 32, %s2569, [#allocation4]
    $region69: #{tpu_custom_call.1} parent=1 // pred_fallthru
      _
    // Predicated region
    $region70: #{tpu_custom_call.1} parent=1 // pred_check
      _
    $region71: #{tpu_custom_call.1} parent=1 // pred_check_branch
      %2573 = sbr.rel (0) target = $region73
    $region72: #{tpu_custom_call.1} parent=1 // pred_region
      %2575 = dma.done [#allocation4], 32
    $region73: #{tpu_custom_call.1} parent=1 // pred_fallthru
      _
    %2576 = vsyncpa [#allocation3], 1
    %2577 = vsyncpa [#allocation6], 1
    %2578 = vsyncpa [#allocation9], 1
    %2579 = vsyncpa [#allocation12], 1
    %2580 = vsyncpa [#allocation4], 1

</llo_original>
